<compile_context>
chip_gen: v7x
topology: tpu7x:2x2x1
jax: 0.10.0
libtpu: 0.0.40
codegen_flags: <defaults>
</compile_context>

<pallas_src>
import math

import jax
import jax.numpy as jnp
from jax.experimental import pallas as pl
from jax.experimental.pallas import tpu as pltpu


def _round_up(x, m):
    return ((x + m - 1) // m) * m


def _matmul_kernel(a_ref, b_ref, o_ref, acc_ref):
    """Tiled matmul with f32 accumulator (no bias)."""
    @pl.when(pl.program_id(2) == 0)
    def _():
        acc_ref[...] = jnp.zeros_like(acc_ref)

    acc_ref[...] += jnp.dot(
        a_ref[...], b_ref[...], preferred_element_type=jnp.float32
    )

    @pl.when(pl.program_id(2) == pl.num_programs(2) - 1)
    def _():
        o_ref[...] = acc_ref[...].astype(o_ref.dtype)


def _matmul_bias_kernel(a_ref, b_ref, bias_ref, o_ref, acc_ref):
    """Tiled matmul with fused broadcast bias add on the final K step."""
    @pl.when(pl.program_id(2) == 0)
    def _():
        acc_ref[...] = jnp.zeros_like(acc_ref)

    acc_ref[...] += jnp.dot(
        a_ref[...], b_ref[...], preferred_element_type=jnp.float32
    )

    @pl.when(pl.program_id(2) == pl.num_programs(2) - 1)
    def _():
        o_ref[...] = (acc_ref[...] + bias_ref[...]).astype(o_ref.dtype)


def _pallas_matmul(a, b, bias=None, *, out_dtype=jnp.float32,
                   tm_target=512, tn_target=512, tk_target=512):
    """a @ b (+ bias) on the MXU: bf16 inputs, f32 accumulation.

    Arbitrary shapes are handled by zero-padding to tile multiples and
    slicing the result back to [M, N].
    """
    M, K = a.shape
    K2, N = b.shape
    assert K == K2, f"inner dims mismatch: {K} vs {K2}"

    # Tiles: as large as the (padded) dims allow, capped at targets.
    # Multiples of 128 satisfy the (8, 128) / bf16 (16, 128) layout rules
    # and keep the output store lane-dense.
    tm = min(tm_target, _round_up(M, 128))
    tn = min(tn_target, _round_up(N, 128))
    tk = min(tk_target, _round_up(K, 128))

    Mp, Kp, Np = _round_up(M, tm), _round_up(K, tk), _round_up(N, tn)

    a_p = a.astype(jnp.bfloat16)
    b_p = b.astype(jnp.bfloat16)
    if (Mp, Kp) != (M, K):
        a_p = jnp.pad(a_p, ((0, Mp - M), (0, Kp - K)))
    if (Kp, Np) != (K, N):
        b_p = jnp.pad(b_p, ((0, Kp - K), (0, Np - N)))

    grid = (Mp // tm, Np // tn, Kp // tk)

    in_specs = [
        pl.BlockSpec((tm, tk), lambda i, j, k: (i, k)),
        pl.BlockSpec((tk, tn), lambda i, j, k: (k, j)),
    ]
    operands = [a_p, b_p]
    if bias is not None:
        bias_p = bias.reshape(1, N).astype(jnp.float32)
        if Np != N:
            bias_p = jnp.pad(bias_p, ((0, 0), (0, Np - N)))
        in_specs.append(pl.BlockSpec((1, tn), lambda i, j, k: (0, j)))
        operands.append(bias_p)
        kernel = _matmul_bias_kernel
    else:
        kernel = _matmul_kernel

    out = pl.pallas_call(
        kernel,
        out_shape=jax.ShapeDtypeStruct((Mp, Np), out_dtype),
        grid_spec=pltpu.PrefetchScalarGridSpec(
            num_scalar_prefetch=0,
            grid=grid,
            in_specs=in_specs,
            out_specs=pl.BlockSpec((tm, tn), lambda i, j, k: (i, j)),
            scratch_shapes=[pltpu.VMEM((tm, tn), jnp.float32)],
        ),
        compiler_params=pltpu.CompilerParams(
            dimension_semantics=("parallel", "parallel", "arbitrary"),
            # Explicit cap well above the ~5 MiB the 512-class tiles use, but
            # comfortably inside every generation's physical VMEM (incl. v7x).
            vmem_limit_bytes=48 * 1024 * 1024,
        ),
    )(*operands)

    if (Mp, Np) != (M, N):
        out = out[:M, :N]
    return out


@jax.jit
def graph_convolution(x, adj, weight, bias=None):
    """GCN layer forward: adj @ (x @ weight) [+ bias]."""
    # support = x @ weight, kept in bf16 to halve the HBM round-trip between
    # the two matmuls (no bias stream here).
    support = _pallas_matmul(x, weight, bias=None, out_dtype=jnp.bfloat16)
    # output = adj @ support (+ bias, fused into final K step when present).
    output = _pallas_matmul(adj, support, bias=bias, out_dtype=jnp.float32)
    return output


def init_params(key, in_features, out_features, with_bias=True):
    """Deterministic xavier_uniform init (matches nn.init.xavier_uniform_ bound)."""
    a = math.sqrt(6.0 / (in_features + out_features))
    weight = jax.random.uniform(
        key, (in_features, out_features), dtype=jnp.float32, minval=-a, maxval=a
    )
    bias = jnp.zeros((out_features,), dtype=jnp.float32) if with_bias else None
    return weight, bias


if __name__ == "__main__":
    key = jax.random.PRNGKey(0)
    k_x, k_adj, k_w1, k_w2, k_b1, k_b2 = jax.random.split(key, 6)

    N = 256            # number of graph nodes
    in_features = 128
    hidden = 128
    nclass = 7         # exercises F_out < 128 / non-tile-multiple path

    x = jax.random.normal(k_x, (N, in_features), dtype=jnp.float32)
    # dense symmetric "adjacency" with self loops, row-normalized
    raw = (jax.random.uniform(k_adj, (N, N)) < 0.05).astype(jnp.float32)
    adj = raw + raw.T + jnp.eye(N, dtype=jnp.float32)
    adj = adj / jnp.sum(adj, axis=1, keepdims=True)

    w1, _ = init_params(k_w1, in_features, hidden, with_bias=True)
    w2, _ = init_params(k_w2, hidden, nclass, with_bias=True)
    # non-zero biases so the fused bias path is actually exercised
    b1 = 0.1 * jax.random.normal(k_b1, (hidden,), dtype=jnp.float32)
    b2 = 0.1 * jax.random.normal(k_b2, (nclass,), dtype=jnp.float32)

    out1 = graph_convolution(x, adj, w1, b1)
    out2 = graph_convolution(out1, adj, w2, b2)
    out2 = jax.block_until_ready(out2)

    # sanity check against plain-JAX f32 reference (bf16 MXU inputs with f32
    # accumulation -> loose tolerance)
    ref1 = adj @ (x @ w1) + b1[None, :]
    ref2 = adj @ (ref1 @ w2) + b2[None, :]

    assert out1.shape == (N, hidden)
    assert out2.shape == (N, nclass)
    assert jnp.allclose(out1, ref1, atol=5e-2, rtol=5e-2)
    assert jnp.allclose(out2, ref2, atol=5e-2, rtol=5e-2)

    print("KERNEL_OK")
</pallas_src>

<mosaic_0001>
module attributes {stable_mosaic.version = 11 : i64} {
  func.func @_matmul_kernel(%arg0: i32, %arg1: i32, %arg2: i32, %arg3: memref<256x128xbf16, #tpu.memory_space<vmem>>, %arg4: memref<128x128xbf16, #tpu.memory_space<vmem>>, %arg5: memref<256x128xbf16, #tpu.memory_space<vmem>>, %arg6: memref<256x128xf32, #tpu.memory_space<vmem>>) attributes {dimension_semantics = [#tpu.dimension_semantics<parallel>, #tpu.dimension_semantics<parallel>, #tpu.dimension_semantics<arbitrary>], iteration_bounds = array<i64: 1, 1, 1>, scalar_prefetch = 0 : i64, scratch_operands = 1 : i64, tpu.core_type = #tpu.core_type<tc>, window_params = [{transform_indices = @transform_0, window_bounds = array<i64: 256, 128>}, {transform_indices = @transform_1, window_bounds = array<i64: 128, 128>}, {transform_indices = @transform_2, window_bounds = array<i64: 256, 128>}]} {
    %c0_i32 = arith.constant 0 : i32
    %0 = arith.cmpi eq, %arg2, %c0_i32 : i32
    %1 = arith.extui %0 : i1 to i32
    %c0_i32_0 = arith.constant 0 : i32
    %2 = arith.cmpi ne, %1, %c0_i32_0 : i32
    scf.if %2 {
      %cst_10 = arith.constant 0.000000e+00 : f32
      %12 = vector.broadcast %cst_10 : f32 to vector<256x128xf32>
      %c0_11 = arith.constant 0 : index
      %c0_12 = arith.constant 0 : index
      %13 = vector.load %arg6[%c0_11, %c0_12] : memref<256x128xf32, #tpu.memory_space<vmem>>, vector<256x128xf32>
      tpu.vector_store %arg6[%c0_11, %c0_12], %12 {strides = array<i32>} : memref<256x128xf32, #tpu.memory_space<vmem>>, vector<256x128xf32>,
    } else {
    }
    %c0 = arith.constant 0 : index
    %c0_1 = arith.constant 0 : index
    %3 = vector.load %arg6[%c0, %c0_1] : memref<256x128xf32, #tpu.memory_space<vmem>>, vector<256x128xf32>
    %c0_2 = arith.constant 0 : index
    %c0_3 = arith.constant 0 : index
    %4 = vector.load %arg3[%c0_2, %c0_3] : memref<256x128xbf16, #tpu.memory_space<vmem>>, vector<256x128xbf16>
    %c0_4 = arith.constant 0 : index
    %c0_5 = arith.constant 0 : index
    %5 = vector.load %arg4[%c0_4, %c0_5] : memref<128x128xbf16, #tpu.memory_space<vmem>>, vector<128x128xbf16>
    %cst = arith.constant dense<0.000000e+00> : vector<256x128xf32>
    %6 = tpu.matmul %4, %5, %cst {dimension_numbers = #tpu.dot_dimension_numbers<[1], [0], [0], [1], [0, 0, 1, 1], [], []>} : vector<256x128xbf16>, vector<128x128xbf16>, vector<256x128xf32> -> vector<256x128xf32>
    %7 = arith.addf %3, %6 : vector<256x128xf32>
    %c0_6 = arith.constant 0 : index
    %c0_7 = arith.constant 0 : index
    %8 = vector.load %arg6[%c0_6, %c0_7] : memref<256x128xf32, #tpu.memory_space<vmem>>, vector<256x128xf32>
    tpu.vector_store %arg6[%c0_6, %c0_7], %7 {strides = array<i32>} : memref<256x128xf32, #tpu.memory_space<vmem>>, vector<256x128xf32>,
    %c0_i32_8 = arith.constant 0 : i32
    %9 = arith.cmpi eq, %arg2, %c0_i32_8 : i32
    %10 = arith.extui %9 : i1 to i32
    %c0_i32_9 = arith.constant 0 : i32
    %11 = arith.cmpi ne, %10, %c0_i32_9 : i32
    scf.if %11 {
      %c0_10 = arith.constant 0 : index
      %c0_11 = arith.constant 0 : index
      %12 = vector.load %arg6[%c0_10, %c0_11] : memref<256x128xf32, #tpu.memory_space<vmem>>, vector<256x128xf32>
      %13 = arith.truncf %12 : vector<256x128xf32> to vector<256x128xbf16>
      %c0_12 = arith.constant 0 : index
      %c0_13 = arith.constant 0 : index
      %14 = vector.load %arg5[%c0_12, %c0_13] : memref<256x128xbf16, #tpu.memory_space<vmem>>, vector<256x128xbf16>
      tpu.vector_store %arg5[%c0_12, %c0_13], %13 {strides = array<i32>} : memref<256x128xbf16, #tpu.memory_space<vmem>>, vector<256x128xbf16>,
    } else {
    }
    return
  }
  func.func @transform_0(%arg0: i32, %arg1: i32, %arg2: i32) -> (i32, i32) {
    %c0_i32 = arith.constant 0 : i32
    return %arg0, %arg2 : i32, i32
  }
  func.func @transform_1(%arg0: i32, %arg1: i32, %arg2: i32) -> (i32, i32) {
    %c0_i32 = arith.constant 0 : i32
    return %arg2, %arg1 : i32, i32
  }
  func.func @transform_2(%arg0: i32, %arg1: i32, %arg2: i32) -> (i32, i32) {
    %c0_i32 = arith.constant 0 : i32
    return %arg0, %arg1 : i32, i32
  }
}

module attributes {stable_mosaic.version = 11 : i64} {
  func.func @_matmul_bias_kernel(%arg0: i32, %arg1: i32, %arg2: i32, %arg3: memref<256x256xbf16, #tpu.memory_space<vmem>>, %arg4: memref<256x128xbf16, #tpu.memory_space<vmem>>, %arg5: memref<1x128xf32, #tpu.memory_space<vmem>>, %arg6: memref<256x128xf32, #tpu.memory_space<vmem>>, %arg7: memref<256x128xf32, #tpu.memory_space<vmem>>) attributes {dimension_semantics = [#tpu.dimension_semantics<parallel>, #tpu.dimension_semantics<parallel>, #tpu.dimension_semantics<arbitrary>], iteration_bounds = array<i64: 1, 1, 1>, scalar_prefetch = 0 : i64, scratch_operands = 1 : i64, tpu.core_type = #tpu.core_type<tc>, window_params = [{transform_indices = @transform_0, window_bounds = array<i64: 256, 256>}, {transform_indices = @transform_1, window_bounds = array<i64: 256, 128>}, {transform_indices = @transform_2, window_bounds = array<i64: 1, 128>}, {transform_indices = @transform_3, window_bounds = array<i64: 256, 128>}]} {
    %c0_i32 = arith.constant 0 : i32
    %0 = arith.cmpi eq, %arg2, %c0_i32 : i32
    %1 = arith.extui %0 : i1 to i32
    %c0_i32_0 = arith.constant 0 : i32
    %2 = arith.cmpi ne, %1, %c0_i32_0 : i32
    scf.if %2 {
      %cst_10 = arith.constant 0.000000e+00 : f32
      %12 = vector.broadcast %cst_10 : f32 to vector<256x128xf32>
      %c0_11 = arith.constant 0 : index
      %c0_12 = arith.constant 0 : index
      %13 = vector.load %arg7[%c0_11, %c0_12] : memref<256x128xf32, #tpu.memory_space<vmem>>, vector<256x128xf32>
      tpu.vector_store %arg7[%c0_11, %c0_12], %12 {strides = array<i32>} : memref<256x128xf32, #tpu.memory_space<vmem>>, vector<256x128xf32>,
    } else {
    }
    %c0 = arith.constant 0 : index
    %c0_1 = arith.constant 0 : index
    %3 = vector.load %arg7[%c0, %c0_1] : memref<256x128xf32, #tpu.memory_space<vmem>>, vector<256x128xf32>
    %c0_2 = arith.constant 0 : index
    %c0_3 = arith.constant 0 : index
    %4 = vector.load %arg3[%c0_2, %c0_3] : memref<256x256xbf16, #tpu.memory_space<vmem>>, vector<256x256xbf16>
    %c0_4 = arith.constant 0 : index
    %c0_5 = arith.constant 0 : index
    %5 = vector.load %arg4[%c0_4, %c0_5] : memref<256x128xbf16, #tpu.memory_space<vmem>>, vector<256x128xbf16>
    %cst = arith.constant dense<0.000000e+00> : vector<256x128xf32>
    %6 = tpu.matmul %4, %5, %cst {dimension_numbers = #tpu.dot_dimension_numbers<[1], [0], [0], [1], [0, 0, 1, 1], [], []>} : vector<256x256xbf16>, vector<256x128xbf16>, vector<256x128xf32> -> vector<256x128xf32>
    %7 = arith.addf %3, %6 : vector<256x128xf32>
    %c0_6 = arith.constant 0 : index
    %c0_7 = arith.constant 0 : index
    %8 = vector.load %arg7[%c0_6, %c0_7] : memref<256x128xf32, #tpu.memory_space<vmem>>, vector<256x128xf32>
    tpu.vector_store %arg7[%c0_6, %c0_7], %7 {strides = array<i32>} : memref<256x128xf32, #tpu.memory_space<vmem>>, vector<256x128xf32>,
    %c0_i32_8 = arith.constant 0 : i32
    %9 = arith.cmpi eq, %arg2, %c0_i32_8 : i32
    %10 = arith.extui %9 : i1 to i32
    %c0_i32_9 = arith.constant 0 : i32
    %11 = arith.cmpi ne, %10, %c0_i32_9 : i32
    scf.if %11 {
      %c0_10 = arith.constant 0 : index
      %c0_11 = arith.constant 0 : index
      %12 = vector.load %arg7[%c0_10, %c0_11] : memref<256x128xf32, #tpu.memory_space<vmem>>, vector<256x128xf32>
      %c0_12 = arith.constant 0 : index
      %c0_13 = arith.constant 0 : index
      %13 = vector.load %arg5[%c0_12, %c0_13] : memref<1x128xf32, #tpu.memory_space<vmem>>, vector<1x128xf32>
      %14 = vector.broadcast %13 : vector<1x128xf32> to vector<256x128xf32>
      %15 = arith.addf %12, %14 : vector<256x128xf32>
      %c0_14 = arith.constant 0 : index
      %c0_15 = arith.constant 0 : index
      %16 = vector.load %arg6[%c0_14, %c0_15] : memref<256x128xf32, #tpu.memory_space<vmem>>, vector<256x128xf32>
      tpu.vector_store %arg6[%c0_14, %c0_15], %15 {strides = array<i32>} : memref<256x128xf32, #tpu.memory_space<vmem>>, vector<256x128xf32>,
    } else {
    }
    return
  }
  func.func @transform_0(%arg0: i32, %arg1: i32, %arg2: i32) -> (i32, i32) {
    %c0_i32 = arith.constant 0 : i32
    return %arg0, %arg2 : i32, i32
  }
  func.func @transform_1(%arg0: i32, %arg1: i32, %arg2: i32) -> (i32, i32) {
    %c0_i32 = arith.constant 0 : i32
    return %arg2, %arg1 : i32, i32
  }
  func.func @transform_2(%arg0: i32, %arg1: i32, %arg2: i32) -> (i32, i32) {
    %c0_i32 = arith.constant 0 : i32
    %c0_i32_0 = arith.constant 0 : i32
    return %c0_i32, %arg1 : i32, i32
  }
  func.func @transform_3(%arg0: i32, %arg1: i32, %arg2: i32) -> (i32, i32) {
    %c0_i32 = arith.constant 0 : i32
    return %arg0, %arg1 : i32, i32
  }
}

</mosaic_0001>

<llo_original>
// kernel: graph_convolution.2
$region0: #{graph_convolution.2}
  #allocation0 [shape = 'u32[]', space=smem, size = 0x4, offset = 0x4, fixed_abs, tag = 'smem constant byte address 0x4 - core index']
  #allocation1 [shape = 'u32[144,128]{1,0:T(1,128)}', space=vmem, size = 0x12000, scoped, tag = 'internal scratch']
  #allocation2 [shape = 'f32[256,128]{1,0:T(8,128)}', space=vmem, size = 0x20000, scoped, tag = 'scratch operand']
  %s0 = inlined_call_operand.vmem [shape: bf16[256,128], index: 0, kind: input, shape index: {}]
  %s1 = inlined_call_operand.vmem [shape: bf16[128,128], index: 1, kind: input, shape index: {}]
  %s2 = inlined_call_operand.vmem [shape: bf16[256,128], index: 2, kind: output, shape index: {}]
  %s3 = sld [smem:[#allocation0]]
  $region26: #{graph_convolution.2} parent=0
    _
  %s5 = ssub.s32 1, %s3
  %s6 = scalar_select 0, %s5, %s3
  // Predicated region
  $region2: #{graph_convolution.2} parent=0 // pred_check
    _
  $region3: #{graph_convolution.2} parent=0 // pred_check_branch
    %8 = sbr.rel (0) target = $region5
  $region4: #{graph_convolution.2} parent=0 // pred_region
    _
  $region5: #{graph_convolution.2} parent=0 // pred_fallthru
    _
  // Predicated region
  $region6: #{graph_convolution.2} parent=0 // pred_check
    _
  $region7: #{graph_convolution.2} parent=0 // pred_check_branch
    %10 = sbr.rel (0) target = $region9
  $region8: #{graph_convolution.2} parent=0 // pred_region
    _
  $region9: #{graph_convolution.2} parent=0 // pred_fallthru
    _
  %p12 = scmp.eq.s32.totalorder 0, 0
  // Predicated region
  $region10: #{graph_convolution.2} parent=0 // pred_check
    %p13 = pneg %p12
  $region11: #{graph_convolution.2} parent=0 // pred_check_branch
    %15 = sbr.rel (%p13) target = $region13
  $region12: #{graph_convolution.2} parent=0 // pred_region
    %16 = vst [vmem:[#allocation2] sm:$0xff] 0.0
    %17 = vst [vmem:[#allocation2 + $0x8] sm:$0xff] 0.0
    %18 = vst [vmem:[#allocation2 + $0x10] sm:$0xff] 0.0
    %19 = vst [vmem:[#allocation2 + $0x18] sm:$0xff] 0.0
    %20 = vst [vmem:[#allocation2 + $0x20] sm:$0xff] 0.0
    %21 = vst [vmem:[#allocation2 + $0x28] sm:$0xff] 0.0
    %22 = vst [vmem:[#allocation2 + $0x30] sm:$0xff] 0.0
    %23 = vst [vmem:[#allocation2 + $0x38] sm:$0xff] 0.0
    %24 = vst [vmem:[#allocation2 + $0x40] sm:$0xff] 0.0
    %25 = vst [vmem:[#allocation2 + $0x48] sm:$0xff] 0.0
    %26 = vst [vmem:[#allocation2 + $0x50] sm:$0xff] 0.0
    %27 = vst [vmem:[#allocation2 + $0x58] sm:$0xff] 0.0
    %28 = vst [vmem:[#allocation2 + $0x60] sm:$0xff] 0.0
    %29 = vst [vmem:[#allocation2 + $0x68] sm:$0xff] 0.0
    %30 = vst [vmem:[#allocation2 + $0x70] sm:$0xff] 0.0
    %31 = vst [vmem:[#allocation2 + $0x78] sm:$0xff] 0.0
    %32 = vst [vmem:[#allocation2 + $0x80] sm:$0xff] 0.0
    %33 = vst [vmem:[#allocation2 + $0x88] sm:$0xff] 0.0
    %34 = vst [vmem:[#allocation2 + $0x90] sm:$0xff] 0.0
    %35 = vst [vmem:[#allocation2 + $0x98] sm:$0xff] 0.0
    %36 = vst [vmem:[#allocation2 + $0xa0] sm:$0xff] 0.0
    %37 = vst [vmem:[#allocation2 + $0xa8] sm:$0xff] 0.0
    %38 = vst [vmem:[#allocation2 + $0xb0] sm:$0xff] 0.0
    %39 = vst [vmem:[#allocation2 + $0xb8] sm:$0xff] 0.0
    %40 = vst [vmem:[#allocation2 + $0xc0] sm:$0xff] 0.0
    %41 = vst [vmem:[#allocation2 + $0xc8] sm:$0xff] 0.0
    %42 = vst [vmem:[#allocation2 + $0xd0] sm:$0xff] 0.0
    %43 = vst [vmem:[#allocation2 + $0xd8] sm:$0xff] 0.0
    %44 = vst [vmem:[#allocation2 + $0xe0] sm:$0xff] 0.0
    %45 = vst [vmem:[#allocation2 + $0xe8] sm:$0xff] 0.0
    %46 = vst [vmem:[#allocation2 + $0xf0] sm:$0xff] 0.0
    %47 = vst [vmem:[#allocation2 + $0xf8] sm:$0xff] 0.0
  $region13: #{graph_convolution.2} parent=0 // pred_fallthru
    _
  %v48 = vld [vmem:[#allocation2] sm:$0xff]
  %v49 = vld [vmem:[#allocation2 + $0x8] sm:$0xff]
  %v50 = vld [vmem:[#allocation2 + $0x10] sm:$0xff]
  %v51 = vld [vmem:[#allocation2 + $0x18] sm:$0xff]
  %v52 = vld [vmem:[#allocation2 + $0x20] sm:$0xff]
  %v53 = vld [vmem:[#allocation2 + $0x28] sm:$0xff]
  %v54 = vld [vmem:[#allocation2 + $0x30] sm:$0xff]
  %v55 = vld [vmem:[#allocation2 + $0x38] sm:$0xff]
  %v56 = vld [vmem:[#allocation2 + $0x40] sm:$0xff]
  %v57 = vld [vmem:[#allocation2 + $0x48] sm:$0xff]
  %v58 = vld [vmem:[#allocation2 + $0x50] sm:$0xff]
  %v59 = vld [vmem:[#allocation2 + $0x58] sm:$0xff]
  %v60 = vld [vmem:[#allocation2 + $0x60] sm:$0xff]
  %v61 = vld [vmem:[#allocation2 + $0x68] sm:$0xff]
  %v62 = vld [vmem:[#allocation2 + $0x70] sm:$0xff]
  %v63 = vld [vmem:[#allocation2 + $0x78] sm:$0xff]
  %v64 = vld [vmem:[#allocation2 + $0x80] sm:$0xff]
  %v65 = vld [vmem:[#allocation2 + $0x88] sm:$0xff]
  %v66 = vld [vmem:[#allocation2 + $0x90] sm:$0xff]
  %v67 = vld [vmem:[#allocation2 + $0x98] sm:$0xff]
  %v68 = vld [vmem:[#allocation2 + $0xa0] sm:$0xff]
  %v69 = vld [vmem:[#allocation2 + $0xa8] sm:$0xff]
  %v70 = vld [vmem:[#allocation2 + $0xb0] sm:$0xff]
  %v71 = vld [vmem:[#allocation2 + $0xb8] sm:$0xff]
  %v72 = vld [vmem:[#allocation2 + $0xc0] sm:$0xff]
  %v73 = vld [vmem:[#allocation2 + $0xc8] sm:$0xff]
  %v74 = vld [vmem:[#allocation2 + $0xd0] sm:$0xff]
  %v75 = vld [vmem:[#allocation2 + $0xd8] sm:$0xff]
  %v76 = vld [vmem:[#allocation2 + $0xe0] sm:$0xff]
  %v77 = vld [vmem:[#allocation2 + $0xe8] sm:$0xff]
  %v78 = vld [vmem:[#allocation2 + $0xf0] sm:$0xff]
  %v79 = vld [vmem:[#allocation2 + $0xf8] sm:$0xff]
  %v80 = vld [vmem:[%s0] sm:$0xf]
  %v81 = vld [vmem:[%s0 + $0x4] sm:$0xf]
  %v82 = vld [vmem:[%s0 + $0x8] sm:$0xf]
  %v83 = vld [vmem:[%s0 + $0xc] sm:$0xf]
  %v84 = vld [vmem:[%s0 + $0x10] sm:$0xf]
  %v85 = vld [vmem:[%s0 + $0x14] sm:$0xf]
  %v86 = vld [vmem:[%s0 + $0x18] sm:$0xf]
  %v87 = vld [vmem:[%s0 + $0x1c] sm:$0xf]
  %v88 = vld [vmem:[%s0 + $0x20] sm:$0xf]
  %v89 = vld [vmem:[%s0 + $0x24] sm:$0xf]
  %v90 = vld [vmem:[%s0 + $0x28] sm:$0xf]
  %v91 = vld [vmem:[%s0 + $0x2c] sm:$0xf]
  %v92 = vld [vmem:[%s0 + $0x30] sm:$0xf]
  %v93 = vld [vmem:[%s0 + $0x34] sm:$0xf]
  %v94 = vld [vmem:[%s0 + $0x38] sm:$0xf]
  %v95 = vld [vmem:[%s0 + $0x3c] sm:$0xf]
  %v96 = vld [vmem:[%s0 + $0x40] sm:$0xf]
  %v97 = vld [vmem:[%s0 + $0x44] sm:$0xf]
  %v98 = vld [vmem:[%s0 + $0x48] sm:$0xf]
  %v99 = vld [vmem:[%s0 + $0x4c] sm:$0xf]
  %v100 = vld [vmem:[%s0 + $0x50] sm:$0xf]
  %v101 = vld [vmem:[%s0 + $0x54] sm:$0xf]
  %v102 = vld [vmem:[%s0 + $0x58] sm:$0xf]
  %v103 = vld [vmem:[%s0 + $0x5c] sm:$0xf]
  %v104 = vld [vmem:[%s0 + $0x60] sm:$0xf]
  %v105 = vld [vmem:[%s0 + $0x64] sm:$0xf]
  %v106 = vld [vmem:[%s0 + $0x68] sm:$0xf]
  %v107 = vld [vmem:[%s0 + $0x6c] sm:$0xf]
  %v108 = vld [vmem:[%s0 + $0x70] sm:$0xf]
  %v109 = vld [vmem:[%s0 + $0x74] sm:$0xf]
  %v110 = vld [vmem:[%s0 + $0x78] sm:$0xf]
  %v111 = vld [vmem:[%s0 + $0x7c] sm:$0xf]
  %v112 = vld [vmem:[%s1] sm:$0xf]
  %v113 = vld [vmem:[%s1 + $0x4] sm:$0xf]
  %v114 = vld [vmem:[%s1 + $0x8] sm:$0xf]
  %v115 = vld [vmem:[%s1 + $0xc] sm:$0xf]
  %v116 = vld [vmem:[%s1 + $0x10] sm:$0xf]
  %v117 = vld [vmem:[%s1 + $0x14] sm:$0xf]
  %v118 = vld [vmem:[%s1 + $0x18] sm:$0xf]
  %v119 = vld [vmem:[%s1 + $0x1c] sm:$0xf]
  %v120 = vld [vmem:[%s1 + $0x20] sm:$0xf]
  %v121 = vld [vmem:[%s1 + $0x24] sm:$0xf]
  %v122 = vld [vmem:[%s1 + $0x28] sm:$0xf]
  %v123 = vld [vmem:[%s1 + $0x2c] sm:$0xf]
  %v124 = vld [vmem:[%s1 + $0x30] sm:$0xf]
  %v125 = vld [vmem:[%s1 + $0x34] sm:$0xf]
  %v126 = vld [vmem:[%s1 + $0x38] sm:$0xf]
  %v127 = vld [vmem:[%s1 + $0x3c] sm:$0xf]
  %v160 = vunpack.c.l.b16 %v80
  %v161 = vunpack.c.l.b16 %v81
  %v162 = vunpack.c.l.b16 %v82
  %v163 = vunpack.c.l.b16 %v83
  %v164 = vunpack.c.l.b16 %v84
  %v165 = vunpack.c.l.b16 %v85
  %v166 = vunpack.c.l.b16 %v86
  %v167 = vunpack.c.l.b16 %v87
  %v168 = vunpack.c.l.b16 %v88
  %v169 = vunpack.c.l.b16 %v89
  %v170 = vunpack.c.l.b16 %v90
  %v171 = vunpack.c.l.b16 %v91
  %v172 = vunpack.c.l.b16 %v92
  %v173 = vunpack.c.l.b16 %v93
  %v174 = vunpack.c.l.b16 %v94
  %v175 = vunpack.c.l.b16 %v95
  %v176 = vunpack.c.l.b16 %v96
  %v177 = vunpack.c.l.b16 %v97
  %v178 = vunpack.c.l.b16 %v98
  %v179 = vunpack.c.l.b16 %v99
  %v180 = vunpack.c.l.b16 %v100
  %v181 = vunpack.c.l.b16 %v101
  %v182 = vunpack.c.l.b16 %v102
  %v183 = vunpack.c.l.b16 %v103
  %v184 = vunpack.c.l.b16 %v104
  %v185 = vunpack.c.l.b16 %v105
  %v186 = vunpack.c.l.b16 %v106
  %v187 = vunpack.c.l.b16 %v107
  %v188 = vunpack.c.l.b16 %v108
  %v189 = vunpack.c.l.b16 %v109
  %v190 = vunpack.c.l.b16 %v110
  %v191 = vunpack.c.l.b16 %v111
  %v192 = vpack.c.b16 %v161, %v160
  %v193 = vpack.c.b16 %v163, %v162
  %v194 = vpack.c.b16 %v165, %v164
  %v195 = vpack.c.b16 %v167, %v166
  %v196 = vpack.c.b16 %v169, %v168
  %v197 = vpack.c.b16 %v171, %v170
  %v198 = vpack.c.b16 %v173, %v172
  %v199 = vpack.c.b16 %v175, %v174
  %v200 = vpack.c.b16 %v177, %v176
  %v201 = vpack.c.b16 %v179, %v178
  %v202 = vpack.c.b16 %v181, %v180
  %v203 = vpack.c.b16 %v183, %v182
  %v204 = vpack.c.b16 %v185, %v184
  %v205 = vpack.c.b16 %v187, %v186
  %v206 = vpack.c.b16 %v189, %v188
  %v207 = vpack.c.b16 %v191, %v190
  %v240 = vunpack.c.l.b16 %v112
  %v241 = vunpack.c.l.b16 %v113
  %v242 = vunpack.c.l.b16 %v114
  %v243 = vunpack.c.l.b16 %v115
  %v244 = vunpack.c.l.b16 %v116
  %v245 = vunpack.c.l.b16 %v117
  %v246 = vunpack.c.l.b16 %v118
  %v247 = vunpack.c.l.b16 %v119
  %v248 = vunpack.c.l.b16 %v120
  %v249 = vunpack.c.l.b16 %v121
  %v250 = vunpack.c.l.b16 %v122
  %v251 = vunpack.c.l.b16 %v123
  %v252 = vunpack.c.l.b16 %v124
  %v253 = vunpack.c.l.b16 %v125
  %v254 = vunpack.c.l.b16 %v126
  %v255 = vunpack.c.l.b16 %v127
  %v256 = vpack.c.b16 %v241, %v240
  %v257 = vpack.c.b16 %v243, %v242
  %v258 = vpack.c.b16 %v245, %v244
  %v259 = vpack.c.b16 %v247, %v246
  %v260 = vpack.c.b16 %v249, %v248
  %v261 = vpack.c.b16 %v251, %v250
  %v262 = vpack.c.b16 %v253, %v252
  %v263 = vpack.c.b16 %v255, %v254
  %272 = vmatprep.subr.bf16.mxu0 0
  %273 = vmatpush1.bf16.msra.mxu0 %v256
  %274 = vmatprep.subr.bf16.mxu0 0
  %275 = vmatpush1.bf16.msra.mxu0 %v257
  %276 = vmatprep.subr.bf16.mxu0 0
  %277 = vmatpush1.bf16.msra.mxu0 %v258
  %278 = vmatprep.subr.bf16.mxu0 0
  %279 = vmatpush1.bf16.msra.mxu0 %v259
  %280 = vmatprep.subr.bf16.mxu0 0
  %281 = vmatpush1.bf16.msra.mxu0 %v260
  %282 = vmatprep.subr.bf16.mxu0 0
  %283 = vmatpush1.bf16.msra.mxu0 %v261
  %284 = vmatprep.subr.bf16.mxu0 0
  %285 = vmatpush1.bf16.msra.mxu0 %v262
  %286 = vmatprep.subr.bf16.mxu0 0
  %287 = vmatpush1.bf16.msra.mxu0 %v263
  %288 = vmatprep.subr.bf16.mxu0 0
  %289 = vmatpush1.bf16.msra.mxu0 0
  %290 = vmatprep.subr.bf16.mxu0 0
  %291 = vmatpush1.bf16.msra.mxu0 0
  %292 = vmatprep.subr.bf16.mxu0 0
  %293 = vmatpush1.bf16.msra.mxu0 0
  %294 = vmatprep.subr.bf16.mxu0 0
  %295 = vmatpush1.bf16.msra.mxu0 0
  %296 = vmatprep.subr.bf16.mxu0 0
  %297 = vmatpush1.bf16.msra.mxu0 0
  %298 = vmatprep.subr.bf16.mxu0 0
  %299 = vmatpush1.bf16.msra.mxu0 0
  %300 = vmatprep.subr.bf16.mxu0 0
  %301 = vmatpush1.bf16.msra.mxu0 0
  %302 = vmatprep.subr.bf16.mxu0 0
  %303 = vmatpush1.bf16.msra.mxu0 0
  %304 = vmatprep.mubr.bf16.mxu0 0
  %305 = vmatmul.mubr.bf16.gmra.mrb[0].mxu0 %v192
  %v306 = vpop.f32.mrb[0].mxu0
  %v307 = vadd.f32 0.0, %v306
  %v308 = vpop.f32.mrb[0].mxu0
  %v309 = vpop.f32.mrb[0].mxu0
  %v310 = vadd.f32 0.0, %v309
  %v311 = vpop.f32.mrb[0].mxu0
  %312 = vmatprep.mubr.bf16.mxu0 0
  %313 = vmatmul.mubr.bf16.gmra.mrb[0].mxu0 %v193
  %v314 = vpop.f32.mrb[0].mxu0
  %v315 = vadd.f32 0.0, %v314
  %v316 = vpop.f32.mrb[0].mxu0
  %v317 = vpop.f32.mrb[0].mxu0
  %v318 = vadd.f32 0.0, %v317
  %v319 = vpop.f32.mrb[0].mxu0
  %320 = vmatprep.mubr.bf16.mxu0 0
  %321 = vmatmul.mubr.bf16.gmra.mrb[0].mxu0 %v194
  %v322 = vpop.f32.mrb[0].mxu0
  %v323 = vadd.f32 0.0, %v322
  %v324 = vpop.f32.mrb[0].mxu0
  %v325 = vpop.f32.mrb[0].mxu0
  %v326 = vadd.f32 0.0, %v325
  %v327 = vpop.f32.mrb[0].mxu0
  %328 = vmatprep.mubr.bf16.mxu0 0
  %329 = vmatmul.mubr.bf16.gmra.mrb[0].mxu0 %v195
  %v330 = vpop.f32.mrb[0].mxu0
  %v331 = vadd.f32 0.0, %v330
  %v332 = vpop.f32.mrb[0].mxu0
  %v333 = vpop.f32.mrb[0].mxu0
  %v334 = vadd.f32 0.0, %v333
  %v335 = vpop.f32.mrb[0].mxu0
  %336 = vmatprep.mubr.bf16.mxu0 0
  %337 = vmatmul.mubr.bf16.gmra.mrb[0].mxu0 %v196
  %v338 = vpop.f32.mrb[0].mxu0
  %v339 = vadd.f32 0.0, %v338
  %v340 = vpop.f32.mrb[0].mxu0
  %v341 = vpop.f32.mrb[0].mxu0
  %v342 = vadd.f32 0.0, %v341
  %v343 = vpop.f32.mrb[0].mxu0
  %344 = vmatprep.mubr.bf16.mxu0 0
  %345 = vmatmul.mubr.bf16.gmra.mrb[0].mxu0 %v197
  %v346 = vpop.f32.mrb[0].mxu0
  %v347 = vadd.f32 0.0, %v346
  %v348 = vpop.f32.mrb[0].mxu0
  %v349 = vpop.f32.mrb[0].mxu0
  %v350 = vadd.f32 0.0, %v349
  %v351 = vpop.f32.mrb[0].mxu0
  %352 = vmatprep.mubr.bf16.mxu0 0
  %353 = vmatmul.mubr.bf16.gmra.mrb[0].mxu0 %v198
  %v354 = vpop.f32.mrb[0].mxu0
  %v355 = vadd.f32 0.0, %v354
  %v356 = vpop.f32.mrb[0].mxu0
  %v357 = vpop.f32.mrb[0].mxu0
  %v358 = vadd.f32 0.0, %v357
  %v359 = vpop.f32.mrb[0].mxu0
  %360 = vmatprep.mubr.bf16.mxu0 0
  %361 = vmatmul.mubr.bf16.gmra.mrb[0].mxu0 %v199
  %v362 = vpop.f32.mrb[0].mxu0
  %v363 = vadd.f32 0.0, %v362
  %v364 = vpop.f32.mrb[0].mxu0
  %v365 = vpop.f32.mrb[0].mxu0
  %v366 = vadd.f32 0.0, %v365
  %v367 = vpop.f32.mrb[0].mxu0
  %368 = vmatprep.mubr.bf16.mxu0 0
  %369 = vmatmul.mubr.bf16.gmra.mrb[0].mxu0 %v200
  %v370 = vpop.f32.mrb[0].mxu0
  %v371 = vadd.f32 0.0, %v370
  %v372 = vpop.f32.mrb[0].mxu0
  %v373 = vpop.f32.mrb[0].mxu0
  %v374 = vadd.f32 0.0, %v373
  %v375 = vpop.f32.mrb[0].mxu0
  %376 = vmatprep.mubr.bf16.mxu0 0
  %377 = vmatmul.mubr.bf16.gmra.mrb[0].mxu0 %v201
  %v378 = vpop.f32.mrb[0].mxu0
  %v379 = vadd.f32 0.0, %v378
  %v380 = vpop.f32.mrb[0].mxu0
  %v381 = vpop.f32.mrb[0].mxu0
  %v382 = vadd.f32 0.0, %v381
  %v383 = vpop.f32.mrb[0].mxu0
  %384 = vmatprep.mubr.bf16.mxu0 0
  %385 = vmatmul.mubr.bf16.gmra.mrb[0].mxu0 %v202
  %v386 = vpop.f32.mrb[0].mxu0
  %v387 = vadd.f32 0.0, %v386
  %v388 = vpop.f32.mrb[0].mxu0
  %v389 = vpop.f32.mrb[0].mxu0
  %v390 = vadd.f32 0.0, %v389
  %v391 = vpop.f32.mrb[0].mxu0
  %392 = vmatprep.mubr.bf16.mxu0 0
  %393 = vmatmul.mubr.bf16.gmra.mrb[0].mxu0 %v203
  %v394 = vpop.f32.mrb[0].mxu0
  %v395 = vadd.f32 0.0, %v394
  %v396 = vpop.f32.mrb[0].mxu0
  %v397 = vpop.f32.mrb[0].mxu0
  %v398 = vadd.f32 0.0, %v397
  %v399 = vpop.f32.mrb[0].mxu0
  %400 = vmatprep.mubr.bf16.mxu0 0
  %401 = vmatmul.mubr.bf16.gmra.mrb[0].mxu0 %v204
  %v402 = vpop.f32.mrb[0].mxu0
  %v403 = vadd.f32 0.0, %v402
  %v404 = vpop.f32.mrb[0].mxu0
  %v405 = vpop.f32.mrb[0].mxu0
  %v406 = vadd.f32 0.0, %v405
  %v407 = vpop.f32.mrb[0].mxu0
  %408 = vmatprep.mubr.bf16.mxu0 0
  %409 = vmatmul.mubr.bf16.gmra.mrb[0].mxu0 %v205
  %v410 = vpop.f32.mrb[0].mxu0
  %v411 = vadd.f32 0.0, %v410
  %v412 = vpop.f32.mrb[0].mxu0
  %v413 = vpop.f32.mrb[0].mxu0
  %v414 = vadd.f32 0.0, %v413
  %v415 = vpop.f32.mrb[0].mxu0
  %416 = vmatprep.mubr.bf16.mxu0 0
  %417 = vmatmul.mubr.bf16.gmra.mrb[0].mxu0 %v206
  %v418 = vpop.f32.mrb[0].mxu0
  %v419 = vadd.f32 0.0, %v418
  %v420 = vpop.f32.mrb[0].mxu0
  %v421 = vpop.f32.mrb[0].mxu0
  %v422 = vadd.f32 0.0, %v421
  %v423 = vpop.f32.mrb[0].mxu0
  %424 = vmatprep.mubr.bf16.mxu0 0
  %425 = vmatmul.mubr.bf16.gmra.mrb[0].mxu0 %v207
  %v426 = vpop.f32.mrb[0].mxu0
  %v427 = vadd.f32 0.0, %v426
  %v428 = vpop.f32.mrb[0].mxu0
  %v429 = vpop.f32.mrb[0].mxu0
  %v430 = vadd.f32 0.0, %v429
  %v431 = vpop.f32.mrb[0].mxu0
  %432 = vdwg.mxu0
  %v433 = vadd.f32 %v48, %v307
  %v434 = vadd.f32 %v49, %v310
  %v435 = vadd.f32 %v50, %v315
  %v436 = vadd.f32 %v51, %v318
  %v437 = vadd.f32 %v52, %v323
  %v438 = vadd.f32 %v53, %v326
  %v439 = vadd.f32 %v54, %v331
  %v440 = vadd.f32 %v55, %v334
  %v441 = vadd.f32 %v56, %v339
  %v442 = vadd.f32 %v57, %v342
  %v443 = vadd.f32 %v58, %v347
  %v444 = vadd.f32 %v59, %v350
  %v445 = vadd.f32 %v60, %v355
  %v446 = vadd.f32 %v61, %v358
  %v447 = vadd.f32 %v62, %v363
  %v448 = vadd.f32 %v63, %v366
  %v449 = vadd.f32 %v64, %v371
  %v450 = vadd.f32 %v65, %v374
  %v451 = vadd.f32 %v66, %v379
  %v452 = vadd.f32 %v67, %v382
  %v453 = vadd.f32 %v68, %v387
  %v454 = vadd.f32 %v69, %v390
  %v455 = vadd.f32 %v70, %v395
  %v456 = vadd.f32 %v71, %v398
  %v457 = vadd.f32 %v72, %v403
  %v458 = vadd.f32 %v73, %v406
  %v459 = vadd.f32 %v74, %v411
  %v460 = vadd.f32 %v75, %v414
  %v461 = vadd.f32 %v76, %v419
  %v462 = vadd.f32 %v77, %v422
  %v463 = vadd.f32 %v78, %v427
  %v464 = vadd.f32 %v79, %v430
  %465 = vst [vmem:[#allocation2] sm:$0xff] %v433
  %466 = vst [vmem:[#allocation2 + $0x8] sm:$0xff] %v434
  %467 = vst [vmem:[#allocation2 + $0x10] sm:$0xff] %v435
  %468 = vst [vmem:[#allocation2 + $0x18] sm:$0xff] %v436
  %469 = vst [vmem:[#allocation2 + $0x20] sm:$0xff] %v437
  %470 = vst [vmem:[#allocation2 + $0x28] sm:$0xff] %v438
  %471 = vst [vmem:[#allocation2 + $0x30] sm:$0xff] %v439
  %472 = vst [vmem:[#allocation2 + $0x38] sm:$0xff] %v440
  %473 = vst [vmem:[#allocation2 + $0x40] sm:$0xff] %v441
  %474 = vst [vmem:[#allocation2 + $0x48] sm:$0xff] %v442
  %475 = vst [vmem:[#allocation2 + $0x50] sm:$0xff] %v443
  %476 = vst [vmem:[#allocation2 + $0x58] sm:$0xff] %v444
  %477 = vst [vmem:[#allocation2 + $0x60] sm:$0xff] %v445
  %478 = vst [vmem:[#allocation2 + $0x68] sm:$0xff] %v446
  %479 = vst [vmem:[#allocation2 + $0x70] sm:$0xff] %v447
  %480 = vst [vmem:[#allocation2 + $0x78] sm:$0xff] %v448
  %481 = vst [vmem:[#allocation2 + $0x80] sm:$0xff] %v449
  %482 = vst [vmem:[#allocation2 + $0x88] sm:$0xff] %v450
  %483 = vst [vmem:[#allocation2 + $0x90] sm:$0xff] %v451
  %484 = vst [vmem:[#allocation2 + $0x98] sm:$0xff] %v452
  %485 = vst [vmem:[#allocation2 + $0xa0] sm:$0xff] %v453
  %486 = vst [vmem:[#allocation2 + $0xa8] sm:$0xff] %v454
  %487 = vst [vmem:[#allocation2 + $0xb0] sm:$0xff] %v455
  %488 = vst [vmem:[#allocation2 + $0xb8] sm:$0xff] %v456
  %489 = vst [vmem:[#allocation2 + $0xc0] sm:$0xff] %v457
  %490 = vst [vmem:[#allocation2 + $0xc8] sm:$0xff] %v458
  %491 = vst [vmem:[#allocation2 + $0xd0] sm:$0xff] %v459
  %492 = vst [vmem:[#allocation2 + $0xd8] sm:$0xff] %v460
  %493 = vst [vmem:[#allocation2 + $0xe0] sm:$0xff] %v461
  %494 = vst [vmem:[#allocation2 + $0xe8] sm:$0xff] %v462
  %495 = vst [vmem:[#allocation2 + $0xf0] sm:$0xff] %v463
  %496 = vst [vmem:[#allocation2 + $0xf8] sm:$0xff] %v464
  // Predicated region
  $region14: #{graph_convolution.2} parent=0 // pred_check
    %p497 = pneg %p12
  $region15: #{graph_convolution.2} parent=0 // pred_check_branch
    %499 = sbr.rel (%p497) target = $region17
  $region16: #{graph_convolution.2} parent=0 // pred_region
    %v500 = vld [vmem:[#allocation2] sm:$0xff]
    %v501 = vld [vmem:[#allocation2 + $0x8] sm:$0xff]
    %v502 = vld [vmem:[#allocation2 + $0x10] sm:$0xff]
    %v503 = vld [vmem:[#allocation2 + $0x18] sm:$0xff]
    %v504 = vld [vmem:[#allocation2 + $0x20] sm:$0xff]
    %v505 = vld [vmem:[#allocation2 + $0x28] sm:$0xff]
    %v506 = vld [vmem:[#allocation2 + $0x30] sm:$0xff]
    %v507 = vld [vmem:[#allocation2 + $0x38] sm:$0xff]
    %v508 = vld [vmem:[#allocation2 + $0x40] sm:$0xff]
    %v509 = vld [vmem:[#allocation2 + $0x48] sm:$0xff]
    %v510 = vld [vmem:[#allocation2 + $0x50] sm:$0xff]
    %v511 = vld [vmem:[#allocation2 + $0x58] sm:$0xff]
    %v512 = vld [vmem:[#allocation2 + $0x60] sm:$0xff]
    %v513 = vld [vmem:[#allocation2 + $0x68] sm:$0xff]
    %v514 = vld [vmem:[#allocation2 + $0x70] sm:$0xff]
    %v515 = vld [vmem:[#allocation2 + $0x78] sm:$0xff]
    %v516 = vld [vmem:[#allocation2 + $0x80] sm:$0xff]
    %v517 = vld [vmem:[#allocation2 + $0x88] sm:$0xff]
    %v518 = vld [vmem:[#allocation2 + $0x90] sm:$0xff]
    %v519 = vld [vmem:[#allocation2 + $0x98] sm:$0xff]
    %v520 = vld [vmem:[#allocation2 + $0xa0] sm:$0xff]
    %v521 = vld [vmem:[#allocation2 + $0xa8] sm:$0xff]
    %v522 = vld [vmem:[#allocation2 + $0xb0] sm:$0xff]
    %v523 = vld [vmem:[#allocation2 + $0xb8] sm:$0xff]
    %v524 = vld [vmem:[#allocation2 + $0xc0] sm:$0xff]
    %v525 = vld [vmem:[#allocation2 + $0xc8] sm:$0xff]
    %v526 = vld [vmem:[#allocation2 + $0xd0] sm:$0xff]
    %v527 = vld [vmem:[#allocation2 + $0xd8] sm:$0xff]
    %v528 = vld [vmem:[#allocation2 + $0xe0] sm:$0xff]
    %v529 = vld [vmem:[#allocation2 + $0xe8] sm:$0xff]
    %v530 = vld [vmem:[#allocation2 + $0xf0] sm:$0xff]
    %v531 = vld [vmem:[#allocation2 + $0xf8] sm:$0xff]
    %v532 = vpack.c.bf16 %v501, %v500
    %v533 = vpack.c.bf16 %v503, %v502
    %v534 = vpack.c.bf16 %v505, %v504
    %v535 = vpack.c.bf16 %v507, %v506
    %v536 = vpack.c.bf16 %v509, %v508
    %v537 = vpack.c.bf16 %v511, %v510
    %v538 = vpack.c.bf16 %v513, %v512
    %v539 = vpack.c.bf16 %v515, %v514
    %v540 = vpack.c.bf16 %v517, %v516
    %v541 = vpack.c.bf16 %v519, %v518
    %v542 = vpack.c.bf16 %v521, %v520
    %v543 = vpack.c.bf16 %v523, %v522
    %v544 = vpack.c.bf16 %v525, %v524
    %v545 = vpack.c.bf16 %v527, %v526
    %v546 = vpack.c.bf16 %v529, %v528
    %v547 = vpack.c.bf16 %v531, %v530
    %v564 = vunpack.c.l.b16 %v532
    %v565 = vunpack.c.h.b16 %v532
    %v566 = vunpack.c.l.b16 %v533
    %v567 = vunpack.c.h.b16 %v533
    %v568 = vunpack.c.l.b16 %v534
    %v569 = vunpack.c.h.b16 %v534
    %v570 = vunpack.c.l.b16 %v535
    %v571 = vunpack.c.h.b16 %v535
    %v572 = vunpack.c.l.b16 %v536
    %v573 = vunpack.c.h.b16 %v536
    %v574 = vunpack.c.l.b16 %v537
    %v575 = vunpack.c.h.b16 %v537
    %v576 = vunpack.c.l.b16 %v538
    %v577 = vunpack.c.h.b16 %v538
    %v578 = vunpack.c.l.b16 %v539
    %v579 = vunpack.c.h.b16 %v539
    %v580 = vunpack.c.l.b16 %v540
    %v581 = vunpack.c.h.b16 %v540
    %v582 = vunpack.c.l.b16 %v541
    %v583 = vunpack.c.h.b16 %v541
    %v584 = vunpack.c.l.b16 %v542
    %v585 = vunpack.c.h.b16 %v542
    %v586 = vunpack.c.l.b16 %v543
    %v587 = vunpack.c.h.b16 %v543
    %v588 = vunpack.c.l.b16 %v544
    %v589 = vunpack.c.h.b16 %v544
    %v590 = vunpack.c.l.b16 %v545
    %v591 = vunpack.c.h.b16 %v545
    %v592 = vunpack.c.l.b16 %v546
    %v593 = vunpack.c.h.b16 %v546
    %v594 = vunpack.c.l.b16 %v547
    %v595 = vunpack.c.h.b16 %v547
    %v596 = vpack.c.b16 %v564, %v564
    %v597 = vpack.c.b16 %v565, %v565
    %v598 = vpack.c.b16 %v566, %v566
    %v599 = vpack.c.b16 %v567, %v567
    %v600 = vpack.c.b16 %v568, %v568
    %v601 = vpack.c.b16 %v569, %v569
    %v602 = vpack.c.b16 %v570, %v570
    %v603 = vpack.c.b16 %v571, %v571
    %v604 = vpack.c.b16 %v572, %v572
    %v605 = vpack.c.b16 %v573, %v573
    %v606 = vpack.c.b16 %v574, %v574
    %v607 = vpack.c.b16 %v575, %v575
    %v608 = vpack.c.b16 %v576, %v576
    %v609 = vpack.c.b16 %v577, %v577
    %v610 = vpack.c.b16 %v578, %v578
    %v611 = vpack.c.b16 %v579, %v579
    %v612 = vpack.c.b16 %v580, %v580
    %v613 = vpack.c.b16 %v581, %v581
    %v614 = vpack.c.b16 %v582, %v582
    %v615 = vpack.c.b16 %v583, %v583
    %v616 = vpack.c.b16 %v584, %v584
    %v617 = vpack.c.b16 %v585, %v585
    %v618 = vpack.c.b16 %v586, %v586
    %v619 = vpack.c.b16 %v587, %v587
    %v620 = vpack.c.b16 %v588, %v588
    %v621 = vpack.c.b16 %v589, %v589
    %v622 = vpack.c.b16 %v590, %v590
    %v623 = vpack.c.b16 %v591, %v591
    %v624 = vpack.c.b16 %v592, %v592
    %v625 = vpack.c.b16 %v593, %v593
    %v626 = vpack.c.b16 %v594, %v594
    %v627 = vpack.c.b16 %v595, %v595
    %660 = vst [vmem:[%s2] sm:$0xf] %v596
    %661 = vst [vmem:[%s2 + $0x4] sm:$0xf] %v597
    %662 = vst [vmem:[%s2 + $0x8] sm:$0xf] %v598
    %663 = vst [vmem:[%s2 + $0xc] sm:$0xf] %v599
    %664 = vst [vmem:[%s2 + $0x10] sm:$0xf] %v600
    %665 = vst [vmem:[%s2 + $0x14] sm:$0xf] %v601
    %666 = vst [vmem:[%s2 + $0x18] sm:$0xf] %v602
    %667 = vst [vmem:[%s2 + $0x1c] sm:$0xf] %v603
    %668 = vst [vmem:[%s2 + $0x20] sm:$0xf] %v604
    %669 = vst [vmem:[%s2 + $0x24] sm:$0xf] %v605
    %670 = vst [vmem:[%s2 + $0x28] sm:$0xf] %v606
    %671 = vst [vmem:[%s2 + $0x2c] sm:$0xf] %v607
    %672 = vst [vmem:[%s2 + $0x30] sm:$0xf] %v608
    %673 = vst [vmem:[%s2 + $0x34] sm:$0xf] %v609
    %674 = vst [vmem:[%s2 + $0x38] sm:$0xf] %v610
    %675 = vst [vmem:[%s2 + $0x3c] sm:$0xf] %v611
    %676 = vst [vmem:[%s2 + $0x40] sm:$0xf] %v612
    %677 = vst [vmem:[%s2 + $0x44] sm:$0xf] %v613
    %678 = vst [vmem:[%s2 + $0x48] sm:$0xf] %v614
    %679 = vst [vmem:[%s2 + $0x4c] sm:$0xf] %v615
    %680 = vst [vmem:[%s2 + $0x50] sm:$0xf] %v616
    %681 = vst [vmem:[%s2 + $0x54] sm:$0xf] %v617
    %682 = vst [vmem:[%s2 + $0x58] sm:$0xf] %v618
    %683 = vst [vmem:[%s2 + $0x5c] sm:$0xf] %v619
    %684 = vst [vmem:[%s2 + $0x60] sm:$0xf] %v620
    %685 = vst [vmem:[%s2 + $0x64] sm:$0xf] %v621
    %686 = vst [vmem:[%s2 + $0x68] sm:$0xf] %v622
    %687 = vst [vmem:[%s2 + $0x6c] sm:$0xf] %v623
    %688 = vst [vmem:[%s2 + $0x70] sm:$0xf] %v624
    %689 = vst [vmem:[%s2 + $0x74] sm:$0xf] %v625
    %690 = vst [vmem:[%s2 + $0x78] sm:$0xf] %v626
    %691 = vst [vmem:[%s2 + $0x7c] sm:$0xf] %v627
  $region17: #{graph_convolution.2} parent=0 // pred_fallthru
    _
  // Predicated region
  $region18: #{graph_convolution.2} parent=0 // pred_check
    _
  $region19: #{graph_convolution.2} parent=0 // pred_check_branch
    %693 = sbr.rel (0) target = $region21
  $region20: #{graph_convolution.2} parent=0 // pred_region
    _
  $region21: #{graph_convolution.2} parent=0 // pred_fallthru
    _
  // Predicated region
  $region22: #{graph_convolution.2} parent=0 // pred_check
    _
  $region23: #{graph_convolution.2} parent=0 // pred_check_branch
    %695 = sbr.rel (0) target = $region25
  $region24: #{graph_convolution.2} parent=0 // pred_region
    _
  $region25: #{graph_convolution.2} parent=0 // pred_fallthru
    _

// kernel: graph_convolution.3
$region0: #{graph_convolution.3}
  #allocation0 [shape = 'u32[]', space=smem, size = 0x4, offset = 0x4, fixed_abs, tag = 'smem constant byte address 0x4 - core index']
  #allocation1 [shape = 'u32[144,128]{1,0:T(1,128)}', space=vmem, size = 0x12000, scoped, tag = 'internal scratch']
  #allocation2 [shape = 'f32[256,128]{1,0:T(8,128)}', space=vmem, size = 0x20000, scoped, tag = 'scratch operand']
  %s0 = inlined_call_operand.vmem [shape: bf16[256,256], index: 0, kind: input, shape index: {}]
  %s1 = inlined_call_operand.vmem [shape: bf16[256,128], index: 1, kind: input, shape index: {}]
  %s2 = inlined_call_operand.vmem [shape: f32[1,128], index: 2, kind: input, shape index: {}]
  %s3 = inlined_call_operand.hbm [shape: f32[256,128], index: 3, kind: output, shape index: {}]
  %s4 = sld [smem:[#allocation0]]
  $region30: #{graph_convolution.3} parent=0
    _
  %s6 = ssub.s32 1, %s4
  %s7 = scalar_select 0, %s6, %s4
  $region1: #{graph_convolution.3} parent=0
    #allocation3 [shape = 'u8[131072]{0}', space=vmem, size = 0x20000, scoped, tag = 'output window, operand 0, single buffered']
    #allocation4 [shape = 's32[1]{0}', space=sflag, size = 0x4, scoped, tag = 'scoped memory for graph_convolution.3']
    %8 = vsyncpa [#allocation4], 0
    // Predicated region
    $region2: #{graph_convolution.3} parent=1 // pred_check
      _
    $region3: #{graph_convolution.3} parent=1 // pred_check_branch
      %10 = sbr.rel (0) target = $region5
    $region4: #{graph_convolution.3} parent=1 // pred_region
      _
    $region5: #{graph_convolution.3} parent=1 // pred_fallthru
      _
    // Predicated region
    $region6: #{graph_convolution.3} parent=1 // pred_check
      _
    $region7: #{graph_convolution.3} parent=1 // pred_check_branch
      %12 = sbr.rel (0) target = $region9
    $region8: #{graph_convolution.3} parent=1 // pred_region
      _
    $region9: #{graph_convolution.3} parent=1 // pred_fallthru
      _
    // Predicated region
    $region10: #{graph_convolution.3} parent=1 // pred_check
      _
    $region11: #{graph_convolution.3} parent=1 // pred_check_branch
      %14 = sbr.rel (0) target = $region13
    $region12: #{graph_convolution.3} parent=1 // pred_region
      _
    $region13: #{graph_convolution.3} parent=1 // pred_fallthru
      _
    %p16 = scmp.eq.s32.totalorder 0, 0
    // Predicated region
    $region14: #{graph_convolution.3} parent=1 // pred_check
      %p17 = pneg %p16
    $region15: #{graph_convolution.3} parent=1 // pred_check_branch
      %19 = sbr.rel (%p17) target = $region17
    $region16: #{graph_convolution.3} parent=1 // pred_region
      %20 = vst [vmem:[#allocation2] sm:$0xff] 0.0
      %21 = vst [vmem:[#allocation2 + $0x8] sm:$0xff] 0.0
      %22 = vst [vmem:[#allocation2 + $0x10] sm:$0xff] 0.0
      %23 = vst [vmem:[#allocation2 + $0x18] sm:$0xff] 0.0
      %24 = vst [vmem:[#allocation2 + $0x20] sm:$0xff] 0.0
      %25 = vst [vmem:[#allocation2 + $0x28] sm:$0xff] 0.0
      %26 = vst [vmem:[#allocation2 + $0x30] sm:$0xff] 0.0
      %27 = vst [vmem:[#allocation2 + $0x38] sm:$0xff] 0.0
      %28 = vst [vmem:[#allocation2 + $0x40] sm:$0xff] 0.0
      %29 = vst [vmem:[#allocation2 + $0x48] sm:$0xff] 0.0
      %30 = vst [vmem:[#allocation2 + $0x50] sm:$0xff] 0.0
      %31 = vst [vmem:[#allocation2 + $0x58] sm:$0xff] 0.0
      %32 = vst [vmem:[#allocation2 + $0x60] sm:$0xff] 0.0
      %33 = vst [vmem:[#allocation2 + $0x68] sm:$0xff] 0.0
      %34 = vst [vmem:[#allocation2 + $0x70] sm:$0xff] 0.0
      %35 = vst [vmem:[#allocation2 + $0x78] sm:$0xff] 0.0
      %36 = vst [vmem:[#allocation2 + $0x80] sm:$0xff] 0.0
      %37 = vst [vmem:[#allocation2 + $0x88] sm:$0xff] 0.0
      %38 = vst [vmem:[#allocation2 + $0x90] sm:$0xff] 0.0
      %39 = vst [vmem:[#allocation2 + $0x98] sm:$0xff] 0.0
      %40 = vst [vmem:[#allocation2 + $0xa0] sm:$0xff] 0.0
      %41 = vst [vmem:[#allocation2 + $0xa8] sm:$0xff] 0.0
      %42 = vst [vmem:[#allocation2 + $0xb0] sm:$0xff] 0.0
      %43 = vst [vmem:[#allocation2 + $0xb8] sm:$0xff] 0.0
      %44 = vst [vmem:[#allocation2 + $0xc0] sm:$0xff] 0.0
      %45 = vst [vmem:[#allocation2 + $0xc8] sm:$0xff] 0.0
      %46 = vst [vmem:[#allocation2 + $0xd0] sm:$0xff] 0.0
      %47 = vst [vmem:[#allocation2 + $0xd8] sm:$0xff] 0.0
      %48 = vst [vmem:[#allocation2 + $0xe0] sm:$0xff] 0.0
      %49 = vst [vmem:[#allocation2 + $0xe8] sm:$0xff] 0.0
      %50 = vst [vmem:[#allocation2 + $0xf0] sm:$0xff] 0.0
      %51 = vst [vmem:[#allocation2 + $0xf8] sm:$0xff] 0.0
    $region17: #{graph_convolution.3} parent=1 // pred_fallthru
      _
    %v52 = vld [vmem:[#allocation2] sm:$0xff]
    %v53 = vld [vmem:[#allocation2 + $0x8] sm:$0xff]
    %v54 = vld [vmem:[#allocation2 + $0x10] sm:$0xff]
    %v55 = vld [vmem:[#allocation2 + $0x18] sm:$0xff]
    %v56 = vld [vmem:[#allocation2 + $0x20] sm:$0xff]
    %v57 = vld [vmem:[#allocation2 + $0x28] sm:$0xff]
    %v58 = vld [vmem:[#allocation2 + $0x30] sm:$0xff]
    %v59 = vld [vmem:[#allocation2 + $0x38] sm:$0xff]
    %v60 = vld [vmem:[#allocation2 + $0x40] sm:$0xff]
    %v61 = vld [vmem:[#allocation2 + $0x48] sm:$0xff]
    %v62 = vld [vmem:[#allocation2 + $0x50] sm:$0xff]
    %v63 = vld [vmem:[#allocation2 + $0x58] sm:$0xff]
    %v64 = vld [vmem:[#allocation2 + $0x60] sm:$0xff]
    %v65 = vld [vmem:[#allocation2 + $0x68] sm:$0xff]
    %v66 = vld [vmem:[#allocation2 + $0x70] sm:$0xff]
    %v67 = vld [vmem:[#allocation2 + $0x78] sm:$0xff]
    %v68 = vld [vmem:[#allocation2 + $0x80] sm:$0xff]
    %v69 = vld [vmem:[#allocation2 + $0x88] sm:$0xff]
    %v70 = vld [vmem:[#allocation2 + $0x90] sm:$0xff]
    %v71 = vld [vmem:[#allocation2 + $0x98] sm:$0xff]
    %v72 = vld [vmem:[#allocation2 + $0xa0] sm:$0xff]
    %v73 = vld [vmem:[#allocation2 + $0xa8] sm:$0xff]
    %v74 = vld [vmem:[#allocation2 + $0xb0] sm:$0xff]
    %v75 = vld [vmem:[#allocation2 + $0xb8] sm:$0xff]
    %v76 = vld [vmem:[#allocation2 + $0xc0] sm:$0xff]
    %v77 = vld [vmem:[#allocation2 + $0xc8] sm:$0xff]
    %v78 = vld [vmem:[#allocation2 + $0xd0] sm:$0xff]
    %v79 = vld [vmem:[#allocation2 + $0xd8] sm:$0xff]
    %v80 = vld [vmem:[#allocation2 + $0xe0] sm:$0xff]
    %v81 = vld [vmem:[#allocation2 + $0xe8] sm:$0xff]
    %v82 = vld [vmem:[#allocation2 + $0xf0] sm:$0xff]
    %v83 = vld [vmem:[#allocation2 + $0xf8] sm:$0xff]
    %v84 = vld [vmem:[%s0] sm:$0xff]
    %v85 = vld [vmem:[%s0 + $0x8] sm:$0xff]
    %v86 = vld [vmem:[%s0 + $0x10] sm:$0xff]
    %v87 = vld [vmem:[%s0 + $0x18] sm:$0xff]
    %v88 = vld [vmem:[%s0 + $0x20] sm:$0xff]
    %v89 = vld [vmem:[%s0 + $0x28] sm:$0xff]
    %v90 = vld [vmem:[%s0 + $0x30] sm:$0xff]
    %v91 = vld [vmem:[%s0 + $0x38] sm:$0xff]
    %v92 = vld [vmem:[%s0 + $0x40] sm:$0xff]
    %v93 = vld [vmem:[%s0 + $0x48] sm:$0xff]
    %v94 = vld [vmem:[%s0 + $0x50] sm:$0xff]
    %v95 = vld [vmem:[%s0 + $0x58] sm:$0xff]
    %v96 = vld [vmem:[%s0 + $0x60] sm:$0xff]
    %v97 = vld [vmem:[%s0 + $0x68] sm:$0xff]
    %v98 = vld [vmem:[%s0 + $0x70] sm:$0xff]
    %v99 = vld [vmem:[%s0 + $0x78] sm:$0xff]
    %v100 = vld [vmem:[%s0 + $0x80] sm:$0xff]
    %v101 = vld [vmem:[%s0 + $0x88] sm:$0xff]
    %v102 = vld [vmem:[%s0 + $0x90] sm:$0xff]
    %v103 = vld [vmem:[%s0 + $0x98] sm:$0xff]
    %v104 = vld [vmem:[%s0 + $0xa0] sm:$0xff]
    %v105 = vld [vmem:[%s0 + $0xa8] sm:$0xff]
    %v106 = vld [vmem:[%s0 + $0xb0] sm:$0xff]
    %v107 = vld [vmem:[%s0 + $0xb8] sm:$0xff]
    %v108 = vld [vmem:[%s0 + $0xc0] sm:$0xff]
    %v109 = vld [vmem:[%s0 + $0xc8] sm:$0xff]
    %v110 = vld [vmem:[%s0 + $0xd0] sm:$0xff]
    %v111 = vld [vmem:[%s0 + $0xd8] sm:$0xff]
    %v112 = vld [vmem:[%s0 + $0xe0] sm:$0xff]
    %v113 = vld [vmem:[%s0 + $0xe8] sm:$0xff]
    %v114 = vld [vmem:[%s0 + $0xf0] sm:$0xff]
    %v115 = vld [vmem:[%s0 + $0xf8] sm:$0xff]
    %v116 = vld [vmem:[%s1] sm:$0xf]
    %v117 = vld [vmem:[%s1 + $0x4] sm:$0xf]
    %v118 = vld [vmem:[%s1 + $0x8] sm:$0xf]
    %v119 = vld [vmem:[%s1 + $0xc] sm:$0xf]
    %v120 = vld [vmem:[%s1 + $0x10] sm:$0xf]
    %v121 = vld [vmem:[%s1 + $0x14] sm:$0xf]
    %v122 = vld [vmem:[%s1 + $0x18] sm:$0xf]
    %v123 = vld [vmem:[%s1 + $0x1c] sm:$0xf]
    %v124 = vld [vmem:[%s1 + $0x20] sm:$0xf]
    %v125 = vld [vmem:[%s1 + $0x24] sm:$0xf]
    %v126 = vld [vmem:[%s1 + $0x28] sm:$0xf]
    %v127 = vld [vmem:[%s1 + $0x2c] sm:$0xf]
    %v128 = vld [vmem:[%s1 + $0x30] sm:$0xf]
    %v129 = vld [vmem:[%s1 + $0x34] sm:$0xf]
    %v130 = vld [vmem:[%s1 + $0x38] sm:$0xf]
    %v131 = vld [vmem:[%s1 + $0x3c] sm:$0xf]
    %v132 = vld [vmem:[%s1 + $0x40] sm:$0xf]
    %v133 = vld [vmem:[%s1 + $0x44] sm:$0xf]
    %v134 = vld [vmem:[%s1 + $0x48] sm:$0xf]
    %v135 = vld [vmem:[%s1 + $0x4c] sm:$0xf]
    %v136 = vld [vmem:[%s1 + $0x50] sm:$0xf]
    %v137 = vld [vmem:[%s1 + $0x54] sm:$0xf]
    %v138 = vld [vmem:[%s1 + $0x58] sm:$0xf]
    %v139 = vld [vmem:[%s1 + $0x5c] sm:$0xf]
    %v140 = vld [vmem:[%s1 + $0x60] sm:$0xf]
    %v141 = vld [vmem:[%s1 + $0x64] sm:$0xf]
    %v142 = vld [vmem:[%s1 + $0x68] sm:$0xf]
    %v143 = vld [vmem:[%s1 + $0x6c] sm:$0xf]
    %v144 = vld [vmem:[%s1 + $0x70] sm:$0xf]
    %v145 = vld [vmem:[%s1 + $0x74] sm:$0xf]
    %v146 = vld [vmem:[%s1 + $0x78] sm:$0xf]
    %v147 = vld [vmem:[%s1 + $0x7c] sm:$0xf]
    %v180 = vunpack.c.l.b16 %v84
    %v181 = vunpack.c.h.b16 %v84
    %v182 = vunpack.c.l.b16 %v85
    %v183 = vunpack.c.h.b16 %v85
    %v184 = vunpack.c.l.b16 %v86
    %v185 = vunpack.c.h.b16 %v86
    %v186 = vunpack.c.l.b16 %v87
    %v187 = vunpack.c.h.b16 %v87
    %v188 = vunpack.c.l.b16 %v88
    %v189 = vunpack.c.h.b16 %v88
    %v190 = vunpack.c.l.b16 %v89
    %v191 = vunpack.c.h.b16 %v89
    %v192 = vunpack.c.l.b16 %v90
    %v193 = vunpack.c.h.b16 %v90
    %v194 = vunpack.c.l.b16 %v91
    %v195 = vunpack.c.h.b16 %v91
    %v196 = vunpack.c.l.b16 %v92
    %v197 = vunpack.c.h.b16 %v92
    %v198 = vunpack.c.l.b16 %v93
    %v199 = vunpack.c.h.b16 %v93
    %v200 = vunpack.c.l.b16 %v94
    %v201 = vunpack.c.h.b16 %v94
    %v202 = vunpack.c.l.b16 %v95
    %v203 = vunpack.c.h.b16 %v95
    %v204 = vunpack.c.l.b16 %v96
    %v205 = vunpack.c.h.b16 %v96
    %v206 = vunpack.c.l.b16 %v97
    %v207 = vunpack.c.h.b16 %v97
    %v208 = vunpack.c.l.b16 %v98
    %v209 = vunpack.c.h.b16 %v98
    %v210 = vunpack.c.l.b16 %v99
    %v211 = vunpack.c.h.b16 %v99
    %v212 = vunpack.c.l.b16 %v100
    %v213 = vunpack.c.h.b16 %v100
    %v214 = vunpack.c.l.b16 %v101
    %v215 = vunpack.c.h.b16 %v101
    %v216 = vunpack.c.l.b16 %v102
    %v217 = vunpack.c.h.b16 %v102
    %v218 = vunpack.c.l.b16 %v103
    %v219 = vunpack.c.h.b16 %v103
    %v220 = vunpack.c.l.b16 %v104
    %v221 = vunpack.c.h.b16 %v104
    %v222 = vunpack.c.l.b16 %v105
    %v223 = vunpack.c.h.b16 %v105
    %v224 = vunpack.c.l.b16 %v106
    %v225 = vunpack.c.h.b16 %v106
    %v226 = vunpack.c.l.b16 %v107
    %v227 = vunpack.c.h.b16 %v107
    %v228 = vunpack.c.l.b16 %v108
    %v229 = vunpack.c.h.b16 %v108
    %v230 = vunpack.c.l.b16 %v109
    %v231 = vunpack.c.h.b16 %v109
    %v232 = vunpack.c.l.b16 %v110
    %v233 = vunpack.c.h.b16 %v110
    %v234 = vunpack.c.l.b16 %v111
    %v235 = vunpack.c.h.b16 %v111
    %v236 = vunpack.c.l.b16 %v112
    %v237 = vunpack.c.h.b16 %v112
    %v238 = vunpack.c.l.b16 %v113
    %v239 = vunpack.c.h.b16 %v113
    %v240 = vunpack.c.l.b16 %v114
    %v241 = vunpack.c.h.b16 %v114
    %v242 = vunpack.c.l.b16 %v115
    %v243 = vunpack.c.h.b16 %v115
    %v244 = vpack.c.b16 %v182, %v180
    %v245 = vpack.c.b16 %v183, %v181
    %v246 = vpack.c.b16 %v186, %v184
    %v247 = vpack.c.b16 %v187, %v185
    %v248 = vpack.c.b16 %v190, %v188
    %v249 = vpack.c.b16 %v191, %v189
    %v250 = vpack.c.b16 %v194, %v192
    %v251 = vpack.c.b16 %v195, %v193
    %v252 = vpack.c.b16 %v198, %v196
    %v253 = vpack.c.b16 %v199, %v197
    %v254 = vpack.c.b16 %v202, %v200
    %v255 = vpack.c.b16 %v203, %v201
    %v256 = vpack.c.b16 %v206, %v204
    %v257 = vpack.c.b16 %v207, %v205
    %v258 = vpack.c.b16 %v210, %v208
    %v259 = vpack.c.b16 %v211, %v209
    %v260 = vpack.c.b16 %v214, %v212
    %v261 = vpack.c.b16 %v215, %v213
    %v262 = vpack.c.b16 %v218, %v216
    %v263 = vpack.c.b16 %v219, %v217
    %v264 = vpack.c.b16 %v222, %v220
    %v265 = vpack.c.b16 %v223, %v221
    %v266 = vpack.c.b16 %v226, %v224
    %v267 = vpack.c.b16 %v227, %v225
    %v268 = vpack.c.b16 %v230, %v228
    %v269 = vpack.c.b16 %v231, %v229
    %v270 = vpack.c.b16 %v234, %v232
    %v271 = vpack.c.b16 %v235, %v233
    %v272 = vpack.c.b16 %v238, %v236
    %v273 = vpack.c.b16 %v239, %v237
    %v274 = vpack.c.b16 %v242, %v240
    %v275 = vpack.c.b16 %v243, %v241
    %v340 = vunpack.c.l.b16 %v116
    %v341 = vunpack.c.l.b16 %v117
    %v342 = vunpack.c.l.b16 %v118
    %v343 = vunpack.c.l.b16 %v119
    %v344 = vunpack.c.l.b16 %v120
    %v345 = vunpack.c.l.b16 %v121
    %v346 = vunpack.c.l.b16 %v122
    %v347 = vunpack.c.l.b16 %v123
    %v348 = vunpack.c.l.b16 %v124
    %v349 = vunpack.c.l.b16 %v125
    %v350 = vunpack.c.l.b16 %v126
    %v351 = vunpack.c.l.b16 %v127
    %v352 = vunpack.c.l.b16 %v128
    %v353 = vunpack.c.l.b16 %v129
    %v354 = vunpack.c.l.b16 %v130
    %v355 = vunpack.c.l.b16 %v131
    %v356 = vunpack.c.l.b16 %v132
    %v357 = vunpack.c.l.b16 %v133
    %v358 = vunpack.c.l.b16 %v134
    %v359 = vunpack.c.l.b16 %v135
    %v360 = vunpack.c.l.b16 %v136
    %v361 = vunpack.c.l.b16 %v137
    %v362 = vunpack.c.l.b16 %v138
    %v363 = vunpack.c.l.b16 %v139
    %v364 = vunpack.c.l.b16 %v140
    %v365 = vunpack.c.l.b16 %v141
    %v366 = vunpack.c.l.b16 %v142
    %v367 = vunpack.c.l.b16 %v143
    %v368 = vunpack.c.l.b16 %v144
    %v369 = vunpack.c.l.b16 %v145
    %v370 = vunpack.c.l.b16 %v146
    %v371 = vunpack.c.l.b16 %v147
    %v372 = vpack.c.b16 %v341, %v340
    %v373 = vpack.c.b16 %v343, %v342
    %v374 = vpack.c.b16 %v345, %v344
    %v375 = vpack.c.b16 %v347, %v346
    %v376 = vpack.c.b16 %v349, %v348
    %v377 = vpack.c.b16 %v351, %v350
    %v378 = vpack.c.b16 %v353, %v352
    %v379 = vpack.c.b16 %v355, %v354
    %v380 = vpack.c.b16 %v357, %v356
    %v381 = vpack.c.b16 %v359, %v358
    %v382 = vpack.c.b16 %v361, %v360
    %v383 = vpack.c.b16 %v363, %v362
    %v384 = vpack.c.b16 %v365, %v364
    %v385 = vpack.c.b16 %v367, %v366
    %v386 = vpack.c.b16 %v369, %v368
    %v387 = vpack.c.b16 %v371, %v370
    %404 = vmatprep.subr.bf16.mxu0 0
    %405 = vmatpush1.bf16.msra.mxu0 %v372
    %406 = vmatprep.subr.bf16.mxu0 0
    %407 = vmatpush1.bf16.msra.mxu0 %v373
    %408 = vmatprep.subr.bf16.mxu0 0
    %409 = vmatpush1.bf16.msra.mxu0 %v374
    %410 = vmatprep.subr.bf16.mxu0 0
    %411 = vmatpush1.bf16.msra.mxu0 %v375
    %412 = vmatprep.subr.bf16.mxu0 0
    %413 = vmatpush1.bf16.msra.mxu0 %v376
    %414 = vmatprep.subr.bf16.mxu0 0
    %415 = vmatpush1.bf16.msra.mxu0 %v377
    %416 = vmatprep.subr.bf16.mxu0 0
    %417 = vmatpush1.bf16.msra.mxu0 %v378
    %418 = vmatprep.subr.bf16.mxu0 0
    %419 = vmatpush1.bf16.msra.mxu0 %v379
    %420 = vmatprep.subr.bf16.mxu0 0
    %421 = vmatpush1.bf16.msra.mxu0 %v380
    %422 = vmatprep.subr.bf16.mxu0 0
    %423 = vmatpush1.bf16.msra.mxu0 %v381
    %424 = vmatprep.subr.bf16.mxu0 0
    %425 = vmatpush1.bf16.msra.mxu0 %v382
    %426 = vmatprep.subr.bf16.mxu0 0
    %427 = vmatpush1.bf16.msra.mxu0 %v383
    %428 = vmatprep.subr.bf16.mxu0 0
    %429 = vmatpush1.bf16.msra.mxu0 %v384
    %430 = vmatprep.subr.bf16.mxu0 0
    %431 = vmatpush1.bf16.msra.mxu0 %v385
    %432 = vmatprep.subr.bf16.mxu0 0
    %433 = vmatpush1.bf16.msra.mxu0 %v386
    %434 = vmatprep.subr.bf16.mxu0 0
    %435 = vmatpush1.bf16.msra.mxu0 %v387
    %436 = vmatprep.mubr.bf16.mxu0 %v245
    %437 = vmatmul.mubr.bf16.gmra.mrb[0].mxu0 %v244
    %v438 = vpop.f32.mrb[0].mxu0
    %v439 = vadd.f32 0.0, %v438
    %v440 = vpop.f32.mrb[0].mxu0
    %v441 = vpop.f32.mrb[0].mxu0
    %v442 = vadd.f32 0.0, %v441
    %v443 = vpop.f32.mrb[0].mxu0
    %444 = vmatprep.mubr.bf16.mxu0 %v247
    %445 = vmatmul.mubr.bf16.gmra.mrb[0].mxu0 %v246
    %v446 = vpop.f32.mrb[0].mxu0
    %v447 = vadd.f32 0.0, %v446
    %v448 = vpop.f32.mrb[0].mxu0
    %v449 = vpop.f32.mrb[0].mxu0
    %v450 = vadd.f32 0.0, %v449
    %v451 = vpop.f32.mrb[0].mxu0
    %452 = vmatprep.mubr.bf16.mxu0 %v249
    %453 = vmatmul.mubr.bf16.gmra.mrb[0].mxu0 %v248
    %v454 = vpop.f32.mrb[0].mxu0
    %v455 = vadd.f32 0.0, %v454
    %v456 = vpop.f32.mrb[0].mxu0
    %v457 = vpop.f32.mrb[0].mxu0
    %v458 = vadd.f32 0.0, %v457
    %v459 = vpop.f32.mrb[0].mxu0
    %460 = vmatprep.mubr.bf16.mxu0 %v251
    %461 = vmatmul.mubr.bf16.gmra.mrb[0].mxu0 %v250
    %v462 = vpop.f32.mrb[0].mxu0
    %v463 = vadd.f32 0.0, %v462
    %v464 = vpop.f32.mrb[0].mxu0
    %v465 = vpop.f32.mrb[0].mxu0
    %v466 = vadd.f32 0.0, %v465
    %v467 = vpop.f32.mrb[0].mxu0
    %468 = vmatprep.mubr.bf16.mxu0 %v253
    %469 = vmatmul.mubr.bf16.gmra.mrb[0].mxu0 %v252
    %v470 = vpop.f32.mrb[0].mxu0
    %v471 = vadd.f32 0.0, %v470
    %v472 = vpop.f32.mrb[0].mxu0
    %v473 = vpop.f32.mrb[0].mxu0
    %v474 = vadd.f32 0.0, %v473
    %v475 = vpop.f32.mrb[0].mxu0
    %476 = vmatprep.mubr.bf16.mxu0 %v255
    %477 = vmatmul.mubr.bf16.gmra.mrb[0].mxu0 %v254
    %v478 = vpop.f32.mrb[0].mxu0
    %v479 = vadd.f32 0.0, %v478
    %v480 = vpop.f32.mrb[0].mxu0
    %v481 = vpop.f32.mrb[0].mxu0
    %v482 = vadd.f32 0.0, %v481
    %v483 = vpop.f32.mrb[0].mxu0
    %484 = vmatprep.mubr.bf16.mxu0 %v257
    %485 = vmatmul.mubr.bf16.gmra.mrb[0].mxu0 %v256
    %v486 = vpop.f32.mrb[0].mxu0
    %v487 = vadd.f32 0.0, %v486
    %v488 = vpop.f32.mrb[0].mxu0
    %v489 = vpop.f32.mrb[0].mxu0
    %v490 = vadd.f32 0.0, %v489
    %v491 = vpop.f32.mrb[0].mxu0
    %492 = vmatprep.mubr.bf16.mxu0 %v259
    %493 = vmatmul.mubr.bf16.gmra.mrb[0].mxu0 %v258
    %v494 = vpop.f32.mrb[0].mxu0
    %v495 = vadd.f32 0.0, %v494
    %v496 = vpop.f32.mrb[0].mxu0
    %v497 = vpop.f32.mrb[0].mxu0
    %v498 = vadd.f32 0.0, %v497
    %v499 = vpop.f32.mrb[0].mxu0
    %500 = vmatprep.mubr.bf16.mxu0 %v261
    %501 = vmatmul.mubr.bf16.gmra.mrb[0].mxu0 %v260
    %v502 = vpop.f32.mrb[0].mxu0
    %v503 = vadd.f32 0.0, %v502
    %v504 = vpop.f32.mrb[0].mxu0
    %v505 = vpop.f32.mrb[0].mxu0
    %v506 = vadd.f32 0.0, %v505
    %v507 = vpop.f32.mrb[0].mxu0
    %508 = vmatprep.mubr.bf16.mxu0 %v263
    %509 = vmatmul.mubr.bf16.gmra.mrb[0].mxu0 %v262
    %v510 = vpop.f32.mrb[0].mxu0
    %v511 = vadd.f32 0.0, %v510
    %v512 = vpop.f32.mrb[0].mxu0
    %v513 = vpop.f32.mrb[0].mxu0
    %v514 = vadd.f32 0.0, %v513
    %v515 = vpop.f32.mrb[0].mxu0
    %516 = vmatprep.mubr.bf16.mxu0 %v265
    %517 = vmatmul.mubr.bf16.gmra.mrb[0].mxu0 %v264
    %v518 = vpop.f32.mrb[0].mxu0
    %v519 = vadd.f32 0.0, %v518
    %v520 = vpop.f32.mrb[0].mxu0
    %v521 = vpop.f32.mrb[0].mxu0
    %v522 = vadd.f32 0.0, %v521
    %v523 = vpop.f32.mrb[0].mxu0
    %524 = vmatprep.mubr.bf16.mxu0 %v267
    %525 = vmatmul.mubr.bf16.gmra.mrb[0].mxu0 %v266
    %v526 = vpop.f32.mrb[0].mxu0
    %v527 = vadd.f32 0.0, %v526
    %v528 = vpop.f32.mrb[0].mxu0
    %v529 = vpop.f32.mrb[0].mxu0
    %v530 = vadd.f32 0.0, %v529
    %v531 = vpop.f32.mrb[0].mxu0
    %532 = vmatprep.mubr.bf16.mxu0 %v269
    %533 = vmatmul.mubr.bf16.gmra.mrb[0].mxu0 %v268
    %v534 = vpop.f32.mrb[0].mxu0
    %v535 = vadd.f32 0.0, %v534
    %v536 = vpop.f32.mrb[0].mxu0
    %v537 = vpop.f32.mrb[0].mxu0
    %v538 = vadd.f32 0.0, %v537
    %v539 = vpop.f32.mrb[0].mxu0
    %540 = vmatprep.mubr.bf16.mxu0 %v271
    %541 = vmatmul.mubr.bf16.gmra.mrb[0].mxu0 %v270
    %v542 = vpop.f32.mrb[0].mxu0
    %v543 = vadd.f32 0.0, %v542
    %v544 = vpop.f32.mrb[0].mxu0
    %v545 = vpop.f32.mrb[0].mxu0
    %v546 = vadd.f32 0.0, %v545
    %v547 = vpop.f32.mrb[0].mxu0
    %548 = vmatprep.mubr.bf16.mxu0 %v273
    %549 = vmatmul.mubr.bf16.gmra.mrb[0].mxu0 %v272
    %v550 = vpop.f32.mrb[0].mxu0
    %v551 = vadd.f32 0.0, %v550
    %v552 = vpop.f32.mrb[0].mxu0
    %v553 = vpop.f32.mrb[0].mxu0
    %v554 = vadd.f32 0.0, %v553
    %v555 = vpop.f32.mrb[0].mxu0
    %556 = vmatprep.mubr.bf16.mxu0 %v275
    %557 = vmatmul.mubr.bf16.gmra.mrb[0].mxu0 %v274
    %v558 = vpop.f32.mrb[0].mxu0
    %v559 = vadd.f32 0.0, %v558
    %v560 = vpop.f32.mrb[0].mxu0
    %v561 = vpop.f32.mrb[0].mxu0
    %v562 = vadd.f32 0.0, %v561
    %v563 = vpop.f32.mrb[0].mxu0
    %564 = vdwg.mxu0
    %v565 = vadd.f32 %v52, %v439
    %v566 = vadd.f32 %v53, %v442
    %v567 = vadd.f32 %v54, %v447
    %v568 = vadd.f32 %v55, %v450
    %v569 = vadd.f32 %v56, %v455
    %v570 = vadd.f32 %v57, %v458
    %v571 = vadd.f32 %v58, %v463
    %v572 = vadd.f32 %v59, %v466
    %v573 = vadd.f32 %v60, %v471
    %v574 = vadd.f32 %v61, %v474
    %v575 = vadd.f32 %v62, %v479
    %v576 = vadd.f32 %v63, %v482
    %v577 = vadd.f32 %v64, %v487
    %v578 = vadd.f32 %v65, %v490
    %v579 = vadd.f32 %v66, %v495
    %v580 = vadd.f32 %v67, %v498
    %v581 = vadd.f32 %v68, %v503
    %v582 = vadd.f32 %v69, %v506
    %v583 = vadd.f32 %v70, %v511
    %v584 = vadd.f32 %v71, %v514
    %v585 = vadd.f32 %v72, %v519
    %v586 = vadd.f32 %v73, %v522
    %v587 = vadd.f32 %v74, %v527
    %v588 = vadd.f32 %v75, %v530
    %v589 = vadd.f32 %v76, %v535
    %v590 = vadd.f32 %v77, %v538
    %v591 = vadd.f32 %v78, %v543
    %v592 = vadd.f32 %v79, %v546
    %v593 = vadd.f32 %v80, %v551
    %v594 = vadd.f32 %v81, %v554
    %v595 = vadd.f32 %v82, %v559
    %v596 = vadd.f32 %v83, %v562
    %597 = vst [vmem:[#allocation2] sm:$0xff] %v565
    %598 = vst [vmem:[#allocation2 + $0x8] sm:$0xff] %v566
    %599 = vst [vmem:[#allocation2 + $0x10] sm:$0xff] %v567
    %600 = vst [vmem:[#allocation2 + $0x18] sm:$0xff] %v568
    %601 = vst [vmem:[#allocation2 + $0x20] sm:$0xff] %v569
    %602 = vst [vmem:[#allocation2 + $0x28] sm:$0xff] %v570
    %603 = vst [vmem:[#allocation2 + $0x30] sm:$0xff] %v571
    %604 = vst [vmem:[#allocation2 + $0x38] sm:$0xff] %v572
    %605 = vst [vmem:[#allocation2 + $0x40] sm:$0xff] %v573
    %606 = vst [vmem:[#allocation2 + $0x48] sm:$0xff] %v574
    %607 = vst [vmem:[#allocation2 + $0x50] sm:$0xff] %v575
    %608 = vst [vmem:[#allocation2 + $0x58] sm:$0xff] %v576
    %609 = vst [vmem:[#allocation2 + $0x60] sm:$0xff] %v577
    %610 = vst [vmem:[#allocation2 + $0x68] sm:$0xff] %v578
    %611 = vst [vmem:[#allocation2 + $0x70] sm:$0xff] %v579
    %612 = vst [vmem:[#allocation2 + $0x78] sm:$0xff] %v580
    %613 = vst [vmem:[#allocation2 + $0x80] sm:$0xff] %v581
    %614 = vst [vmem:[#allocation2 + $0x88] sm:$0xff] %v582
    %615 = vst [vmem:[#allocation2 + $0x90] sm:$0xff] %v583
    %616 = vst [vmem:[#allocation2 + $0x98] sm:$0xff] %v584
    %617 = vst [vmem:[#allocation2 + $0xa0] sm:$0xff] %v585
    %618 = vst [vmem:[#allocation2 + $0xa8] sm:$0xff] %v586
    %619 = vst [vmem:[#allocation2 + $0xb0] sm:$0xff] %v587
    %620 = vst [vmem:[#allocation2 + $0xb8] sm:$0xff] %v588
    %621 = vst [vmem:[#allocation2 + $0xc0] sm:$0xff] %v589
    %622 = vst [vmem:[#allocation2 + $0xc8] sm:$0xff] %v590
    %623 = vst [vmem:[#allocation2 + $0xd0] sm:$0xff] %v591
    %624 = vst [vmem:[#allocation2 + $0xd8] sm:$0xff] %v592
    %625 = vst [vmem:[#allocation2 + $0xe0] sm:$0xff] %v593
    %626 = vst [vmem:[#allocation2 + $0xe8] sm:$0xff] %v594
    %627 = vst [vmem:[#allocation2 + $0xf0] sm:$0xff] %v595
    %628 = vst [vmem:[#allocation2 + $0xf8] sm:$0xff] %v596
    // Predicated region
    $region18: #{graph_convolution.3} parent=1 // pred_check
      %p629 = pneg %p16
    $region19: #{graph_convolution.3} parent=1 // pred_check_branch
      %631 = sbr.rel (%p629) target = $region21
    $region20: #{graph_convolution.3} parent=1 // pred_region
      %v632 = vld [vmem:[#allocation2] sm:$0xff]
      %v633 = vld [vmem:[#allocation2 + $0x8] sm:$0xff]
      %v634 = vld [vmem:[#allocation2 + $0x10] sm:$0xff]
      %v635 = vld [vmem:[#allocation2 + $0x18] sm:$0xff]
      %v636 = vld [vmem:[#allocation2 + $0x20] sm:$0xff]
      %v637 = vld [vmem:[#allocation2 + $0x28] sm:$0xff]
      %v638 = vld [vmem:[#allocation2 + $0x30] sm:$0xff]
      %v639 = vld [vmem:[#allocation2 + $0x38] sm:$0xff]
      %v640 = vld [vmem:[#allocation2 + $0x40] sm:$0xff]
      %v641 = vld [vmem:[#allocation2 + $0x48] sm:$0xff]
      %v642 = vld [vmem:[#allocation2 + $0x50] sm:$0xff]
      %v643 = vld [vmem:[#allocation2 + $0x58] sm:$0xff]
      %v644 = vld [vmem:[#allocation2 + $0x60] sm:$0xff]
      %v645 = vld [vmem:[#allocation2 + $0x68] sm:$0xff]
      %v646 = vld [vmem:[#allocation2 + $0x70] sm:$0xff]
      %v647 = vld [vmem:[#allocation2 + $0x78] sm:$0xff]
      %v648 = vld [vmem:[#allocation2 + $0x80] sm:$0xff]
      %v649 = vld [vmem:[#allocation2 + $0x88] sm:$0xff]
      %v650 = vld [vmem:[#allocation2 + $0x90] sm:$0xff]
      %v651 = vld [vmem:[#allocation2 + $0x98] sm:$0xff]
      %v652 = vld [vmem:[#allocation2 + $0xa0] sm:$0xff]
      %v653 = vld [vmem:[#allocation2 + $0xa8] sm:$0xff]
      %v654 = vld [vmem:[#allocation2 + $0xb0] sm:$0xff]
      %v655 = vld [vmem:[#allocation2 + $0xb8] sm:$0xff]
      %v656 = vld [vmem:[#allocation2 + $0xc0] sm:$0xff]
      %v657 = vld [vmem:[#allocation2 + $0xc8] sm:$0xff]
      %v658 = vld [vmem:[#allocation2 + $0xd0] sm:$0xff]
      %v659 = vld [vmem:[#allocation2 + $0xd8] sm:$0xff]
      %v660 = vld [vmem:[#allocation2 + $0xe0] sm:$0xff]
      %v661 = vld [vmem:[#allocation2 + $0xe8] sm:$0xff]
      %v662 = vld [vmem:[#allocation2 + $0xf0] sm:$0xff]
      %v663 = vld [vmem:[#allocation2 + $0xf8] sm:$0xff]
      %v664 = vld [vmem:[%s2] sm:$0x1]
      %v666 = vlaneseq
      %v667 = vshrl.u32 %v666, 7
      %v668 = vsub.s32 0, %v667
      %v669 = vrot.slane %v664, %v668
      %v671 = vadd.f32 %v632, %v669
      %v672 = vadd.f32 %v633, %v669
      %v673 = vadd.f32 %v634, %v669
      %v674 = vadd.f32 %v635, %v669
      %v675 = vadd.f32 %v636, %v669
      %v676 = vadd.f32 %v637, %v669
      %v677 = vadd.f32 %v638, %v669
      %v678 = vadd.f32 %v639, %v669
      %v679 = vadd.f32 %v640, %v669
      %v680 = vadd.f32 %v641, %v669
      %v681 = vadd.f32 %v642, %v669
      %v682 = vadd.f32 %v643, %v669
      %v683 = vadd.f32 %v644, %v669
      %v684 = vadd.f32 %v645, %v669
      %v685 = vadd.f32 %v646, %v669
      %v686 = vadd.f32 %v647, %v669
      %v687 = vadd.f32 %v648, %v669
      %v688 = vadd.f32 %v649, %v669
      %v689 = vadd.f32 %v650, %v669
      %v690 = vadd.f32 %v651, %v669
      %v691 = vadd.f32 %v652, %v669
      %v692 = vadd.f32 %v653, %v669
      %v693 = vadd.f32 %v654, %v669
      %v694 = vadd.f32 %v655, %v669
      %v695 = vadd.f32 %v656, %v669
      %v696 = vadd.f32 %v657, %v669
      %v697 = vadd.f32 %v658, %v669
      %v698 = vadd.f32 %v659, %v669
      %v699 = vadd.f32 %v660, %v669
      %v700 = vadd.f32 %v661, %v669
      %v701 = vadd.f32 %v662, %v669
      %v702 = vadd.f32 %v663, %v669
      %703 = vst [vmem:[#allocation3] sm:$0xff] %v671
      %704 = vst [vmem:[#allocation3 + $0x8] sm:$0xff] %v672
      %705 = vst [vmem:[#allocation3 + $0x10] sm:$0xff] %v673
      %706 = vst [vmem:[#allocation3 + $0x18] sm:$0xff] %v674
      %707 = vst [vmem:[#allocation3 + $0x20] sm:$0xff] %v675
      %708 = vst [vmem:[#allocation3 + $0x28] sm:$0xff] %v676
      %709 = vst [vmem:[#allocation3 + $0x30] sm:$0xff] %v677
      %710 = vst [vmem:[#allocation3 + $0x38] sm:$0xff] %v678
      %711 = vst [vmem:[#allocation3 + $0x40] sm:$0xff] %v679
      %712 = vst [vmem:[#allocation3 + $0x48] sm:$0xff] %v680
      %713 = vst [vmem:[#allocation3 + $0x50] sm:$0xff] %v681
      %714 = vst [vmem:[#allocation3 + $0x58] sm:$0xff] %v682
      %715 = vst [vmem:[#allocation3 + $0x60] sm:$0xff] %v683
      %716 = vst [vmem:[#allocation3 + $0x68] sm:$0xff] %v684
      %717 = vst [vmem:[#allocation3 + $0x70] sm:$0xff] %v685
      %718 = vst [vmem:[#allocation3 + $0x78] sm:$0xff] %v686
      %719 = vst [vmem:[#allocation3 + $0x80] sm:$0xff] %v687
      %720 = vst [vmem:[#allocation3 + $0x88] sm:$0xff] %v688
      %721 = vst [vmem:[#allocation3 + $0x90] sm:$0xff] %v689
      %722 = vst [vmem:[#allocation3 + $0x98] sm:$0xff] %v690
      %723 = vst [vmem:[#allocation3 + $0xa0] sm:$0xff] %v691
      %724 = vst [vmem:[#allocation3 + $0xa8] sm:$0xff] %v692
      %725 = vst [vmem:[#allocation3 + $0xb0] sm:$0xff] %v693
      %726 = vst [vmem:[#allocation3 + $0xb8] sm:$0xff] %v694
      %727 = vst [vmem:[#allocation3 + $0xc0] sm:$0xff] %v695
      %728 = vst [vmem:[#allocation3 + $0xc8] sm:$0xff] %v696
      %729 = vst [vmem:[#allocation3 + $0xd0] sm:$0xff] %v697
      %730 = vst [vmem:[#allocation3 + $0xd8] sm:$0xff] %v698
      %731 = vst [vmem:[#allocation3 + $0xe0] sm:$0xff] %v699
      %732 = vst [vmem:[#allocation3 + $0xe8] sm:$0xff] %v700
      %733 = vst [vmem:[#allocation3 + $0xf0] sm:$0xff] %v701
      %734 = vst [vmem:[#allocation3 + $0xf8] sm:$0xff] %v702
    $region21: #{graph_convolution.3} parent=1 // pred_fallthru
      _
    // Predicated region
    $region22: #{graph_convolution.3} parent=1 // pred_check
      _
    $region23: #{graph_convolution.3} parent=1 // pred_check_branch
      %736 = sbr.rel (0) target = $region25
    $region24: #{graph_convolution.3} parent=1 // pred_region
      %s738 = ssub.s32 4096, 4096
      %739 = vsyncadd [#allocation4], %s738
      %s740 = sshll.u32 [#allocation3], 4
      %s741 = int_to_ptr.vmem [resolvable:$true] %s740
      %746 = dma.vmem_to_hbm [thread:$0]  %s741, 4096, %s3, [#allocation4], 128, 128, 8
    $region25: #{graph_convolution.3} parent=1 // pred_fallthru
      _
    // Predicated region
    $region26: #{graph_convolution.3} parent=1 // pred_check
      _
    $region27: #{graph_convolution.3} parent=1 // pred_check_branch
      %748 = sbr.rel (0) target = $region29
    $region28: #{graph_convolution.3} parent=1 // pred_region
      %749 = dma.done [#allocation4], 4096
    $region29: #{graph_convolution.3} parent=1 // pred_fallthru
      _
    %750 = vsyncpa [#allocation4], 1

</llo_original>
